<compile_context>
chip_gen: v7x
topology: tpu7x:2x2x1
jax: 0.10.0
libtpu: 0.0.40
codegen_flags: <defaults>
</compile_context>

<pallas_src>
import jax
import jax.numpy as jnp
from jax.experimental import pallas as pl
from jax.experimental.pallas import tpu as pltpu


def cnn_kernel(x_ref, wconv_ref, bconv_ref, wfc_ref, bfc_ref, out_ref,
               acc_ref, halo_ref):
    """x_ref:(TB,TL) VMEM | wconv:(3,16) SMEM | bconv:(1,16) SMEM |
    wfc:(out,16) VMEM | bfc:(1,out) SMEM | out:(TB,out) |
    acc:(TB,16) running max | halo:(TB,2) carry of previous L-tile's last 2 columns."""
    l = pl.program_id(1)
    n_l = pl.num_programs(1)
    TB, TL = x_ref.shape
    C = wconv_ref.shape[1]
    out_size = wfc_ref.shape[0]

    @pl.when(l == 0)
    def _init():
        acc_ref[...] = jnp.zeros_like(acc_ref)       # post-ReLU max >= 0, so 0-init is exact
        halo_ref[...] = jnp.zeros_like(halo_ref)     # zero padding left of position 0

    xt = x_ref[...]                                  # (TB, TL) f32

    # ---- (1) deferred boundary position of the PREVIOUS L-tile -------------------
    # Global position l*TL-1 needed x[l*TL] (this tile's first column); finish it now.
    @pl.when(l > 0)
    def _deferred():
        h0 = halo_ref[:, 0:1]            # x[l*TL - 2]
        h1 = halo_ref[:, 1:2]            # x[l*TL - 1]
        x0 = xt[:, 0:1]                  # x[l*TL]
        for c in range(C):
            w0 = wconv_ref[0, c]; w1 = wconv_ref[1, c]; w2 = wconv_ref[2, c]
            bc = bconv_ref[0, c]
            v = jnp.maximum(w0 * h0 + w1 * h1 + w2 * x0 + bc, 0.0)       # (TB, 1)
            acc_ref[:, c:c + 1] = jnp.maximum(acc_ref[:, c:c + 1], v)

    # ---- (2) main tile: channel-unrolled, lane-dense (TB, TL) conv + relu + max ---
    zero_col = jnp.zeros((TB, 1), xt.dtype)
    x_m1 = jnp.concatenate([halo_ref[:, 1:2], xt[:, :TL - 1]], axis=1)   # x[p-1] (exact)
    x_p1 = jnp.concatenate([xt[:, 1:], zero_col], axis=1)                # x[p+1] (0 valid only at last tile)
    col = jax.lax.broadcasted_iota(jnp.int32, (1, TL), 1)
    # local col TL-1 needs the next tile's first column -> handled by the next step's
    # deferred pass, unless this is the last tile (then the appended 0 IS the conv padding).
    valid = jnp.logical_or(col < (TL - 1), l == n_l - 1)                 # (1, TL)

    for c in range(C):
        w0 = wconv_ref[0, c]; w1 = wconv_ref[1, c]; w2 = wconv_ref[2, c]
        bc = bconv_ref[0, c]
        conv_c = w0 * x_m1 + w1 * xt + w2 * x_p1 + bc                    # (TB, TL)
        relu_c = jnp.maximum(conv_c, 0.0)
        relu_c = jnp.where(valid, relu_c, 0.0)        # masked lanes -> 0 (safe: true max >= 0)
        tile_max = jnp.max(relu_c, axis=-1, keepdims=True)               # (TB, 1) lane reduce
        acc_ref[:, c:c + 1] = jnp.maximum(acc_ref[:, c:c + 1], tile_max)

    # ---- (3) carry last two columns for the next L-tile ---------------------------
    halo_ref[...] = xt[:, TL - 2:TL]

    # ---- (4) epilogue: Dropout(eval)=identity, then Linear(16->out) on the VPU ----
    # TODO(synk): training-mode Dropout(0.3) (stochastic mask via pltpu.prng_*) not implemented.
    @pl.when(l == n_l - 1)
    def _finalize():
        pooled = acc_ref[...]                                            # (TB, 16)
        for o in range(out_size):
            w_row = wfc_ref[o:o + 1, :]                                  # (1, 16)
            y = jnp.sum(pooled * w_row, axis=-1, keepdims=True) + bfc_ref[0, o]
            out_ref[:, o:o + 1] = y.astype(out_ref.dtype)


def _pick_tile(dim, candidates):
    for t in candidates:
        if dim >= t and dim % t == 0:
            return t
    return dim   # full-extent block is always legal


def cnn_model_forward(x, params):
    """x: (B, input_size) float32 -> (B, output_size) float32 (eval mode)."""
    w_conv, b_conv, w_fc, b_fc = params          # PyTorch layouts
    B, L = x.shape
    assert L >= 2, "kernel assumes input_size >= 2"
    out_size = w_fc.shape[0]

    # Tiny parameter reshapes (scalars live in SMEM inside the kernel).
    w_conv_t = jnp.transpose(w_conv[:, 0, :], (1, 0))    # (16,1,3) -> (3,16), w[k, c]
    b_conv_2d = b_conv.reshape(1, -1)                    # (1, 16)
    b_fc_2d = b_fc.reshape(1, -1)                        # (1, out)

    # Tile sizes: lane axis = L.  TB<=256, TL<=2048 -> ~2 MiB/block (double-buffered ~4 MiB),
    # comfortably inside v7x's 64 MiB VMEM and v5e/v6e's 128 MiB.
    TB = _pick_tile(B, (256, 128, 64, 32, 16, 8))
    TL = _pick_tile(L, (2048, 1024, 512, 256, 128))
    grid = (B // TB, L // TL)

    smem = pl.BlockSpec(memory_space=pltpu.MemorySpace.SMEM)
    return pl.pallas_call(
        cnn_kernel,
        out_shape=jax.ShapeDtypeStruct((B, out_size), jnp.float32),
        grid=grid,
        in_specs=[
            pl.BlockSpec((TB, TL), lambda i, l: (i, l)),        # x tiles
            smem,                                               # conv weight (3,16) scalars
            smem,                                               # conv bias (1,16) scalars
            pl.BlockSpec((out_size, 16), lambda i, l: (0, 0)),  # fc weight, resident in VMEM
            smem,                                               # fc bias (1,out) scalars
        ],
        out_specs=pl.BlockSpec((TB, out_size), lambda i, l: (i, 0)),
        scratch_shapes=[
            pltpu.VMEM((TB, 16), jnp.float32),   # running-max pooled accumulator
            pltpu.VMEM((TB, 2), jnp.float32),    # 2-column halo carried across L-tiles
        ],
        compiler_params=pltpu.CompilerParams(
            dimension_semantics=("parallel", "arbitrary"),
            vmem_limit_bytes=32 * 1024 * 1024,
        ),
    )(x, w_conv_t, b_conv_2d, w_fc, b_fc_2d)


def init_params(key, output_size=1):
    """Deterministic synthetic params with the PyTorch module's layouts."""
    k1, k2, k3, k4 = jax.random.split(key, 4)
    w_conv = jax.random.normal(k1, (16, 1, 3), jnp.float32) * 0.1      # Conv1d(1,16,3) weight
    b_conv = jax.random.normal(k2, (16,), jnp.float32) * 0.1           # Conv1d bias
    w_fc = jax.random.normal(k3, (output_size, 16), jnp.float32) * 0.1 # Linear weight (out, in)
    b_fc = jax.random.normal(k4, (output_size,), jnp.float32) * 0.1    # Linear bias
    return (w_conv, b_conv, w_fc, b_fc)


def reference_forward(x, params):
    """Pure-JAX reference matching the PyTorch forward (eval mode)."""
    w_conv, b_conv, w_fc, b_fc = params
    B, L = x.shape
    x_pad = jnp.pad(x, ((0, 0), (1, 1)))                                 # (B, L+2)
    cols = jnp.stack([x_pad[:, k:k + L] for k in range(3)], axis=-1)     # (B, L, 3)
    conv = jnp.einsum('blk,ck->bcl', cols, w_conv[:, 0, :]) + b_conv[None, :, None]
    pooled = jnp.max(jnp.maximum(conv, 0.0), axis=-1)                    # (B, 16)
    return pooled @ w_fc.T + b_fc                                        # (B, out)


if __name__ == "__main__":
    params = init_params(jax.random.PRNGKey(42), output_size=1)

    # Small primary test (batch=4, input_size=16) -> single-tile path.
    x_small = jax.random.normal(jax.random.PRNGKey(0), (4, 16), jnp.float32)
    out_small = jax.block_until_ready(cnn_model_forward(x_small, params))
    ref_small = reference_forward(x_small, params)
    assert out_small.shape == (4, 1)
    assert jnp.allclose(out_small, ref_small, atol=1e-5, rtol=1e-5), (out_small, ref_small)

    # Larger shape exercising the (B-tile, L-tile) grid, accumulator and halo carry.
    x_big = jax.random.normal(jax.random.PRNGKey(1), (16, 256), jnp.float32)
    out_big = jax.block_until_ready(cnn_model_forward(x_big, params))
    ref_big = reference_forward(x_big, params)
    assert jnp.allclose(out_big, ref_big, atol=1e-5, rtol=1e-5), (out_big, ref_big)

    print("KERNEL_OK")
</pallas_src>

<mosaic_0001>
module attributes {stable_mosaic.version = 11 : i64} {
  func.func @cnn_kernel(%arg0: i32, %arg1: i32, %arg2: memref<4x16xf32, #tpu.memory_space<vmem>>, %arg3: memref<3x16xf32, #tpu.memory_space<smem>>, %arg4: memref<1x16xf32, #tpu.memory_space<smem>>, %arg5: memref<1x16xf32, #tpu.memory_space<vmem>>, %arg6: memref<1x1xf32, #tpu.memory_space<smem>>, %arg7: memref<4x1xf32, #tpu.memory_space<vmem>>, %arg8: memref<4x16xf32, #tpu.memory_space<vmem>>, %arg9: memref<4x2xf32, #tpu.memory_space<vmem>>) attributes {dimension_semantics = [#tpu.dimension_semantics<parallel>, #tpu.dimension_semantics<arbitrary>], iteration_bounds = array<i64: 1, 1>, scalar_prefetch = 0 : i64, scratch_operands = 2 : i64, tpu.core_type = #tpu.core_type<tc>, window_params = [{transform_indices = @transform_0, window_bounds = array<i64: 4, 16>}, {transform_indices = @transform_1, window_bounds = array<i64: 3, 16>}, {transform_indices = @transform_2, window_bounds = array<i64: 1, 16>}, {pipeline_mode = #tpu.pipeline_mode<synchronous>, transform_indices = @transform_3, window_bounds = array<i64: 1, 16>}, {transform_indices = @transform_4, window_bounds = array<i64: 1, 1>}, {transform_indices = @transform_5, window_bounds = array<i64: 4, 1>}]} {
    %c0_i32 = arith.constant 0 : i32
    %0 = arith.cmpi eq, %arg1, %c0_i32 : i32
    %1 = arith.extui %0 : i1 to i32
    %c0_i32_0 = arith.constant 0 : i32
    %2 = arith.cmpi ne, %1, %c0_i32_0 : i32
    scf.if %2 {
      %cst_236 = arith.constant 0.000000e+00 : f32
      %424 = vector.broadcast %cst_236 : f32 to vector<4x16xf32>
      %c0_237 = arith.constant 0 : index
      %c0_238 = arith.constant 0 : index
      %425 = vector.load %arg8[%c0_237, %c0_238] : memref<4x16xf32, #tpu.memory_space<vmem>>, vector<4x16xf32>
      tpu.vector_store %arg8[%c0_237, %c0_238], %424 {strides = array<i32>} : memref<4x16xf32, #tpu.memory_space<vmem>>, vector<4x16xf32>,
      %cst_239 = arith.constant 0.000000e+00 : f32
      %426 = vector.broadcast %cst_239 : f32 to vector<4x2xf32>
      %c0_240 = arith.constant 0 : index
      %c0_241 = arith.constant 0 : index
      %427 = vector.load %arg9[%c0_240, %c0_241] : memref<4x2xf32, #tpu.memory_space<vmem>>, vector<4x2xf32>
      tpu.vector_store %arg9[%c0_240, %c0_241], %426 {strides = array<i32>} : memref<4x2xf32, #tpu.memory_space<vmem>>, vector<4x2xf32>,
    } else {
    }
    %c0 = arith.constant 0 : index
    %c0_1 = arith.constant 0 : index
    %3 = vector.load %arg2[%c0, %c0_1] : memref<4x16xf32, #tpu.memory_space<vmem>>, vector<4x16xf32>
    %c0_i32_2 = arith.constant 0 : i32
    %4 = arith.cmpi sgt, %arg1, %c0_i32_2 : i32
    %5 = arith.extui %4 : i1 to i32
    %c0_i32_3 = arith.constant 0 : i32
    %6 = arith.cmpi ne, %5, %c0_i32_3 : i32
    scf.if %6 {
      %c0_236 = arith.constant 0 : index
      %c0_237 = arith.constant 0 : index
      %424 = vector.load %arg9[%c0_236, %c0_237] : memref<4x2xf32, #tpu.memory_space<vmem>>, vector<4x1xf32>
      %c0_238 = arith.constant 0 : index
      %c1_239 = arith.constant 1 : index
      %425 = vector.load %arg9[%c0_238, %c1_239] : memref<4x2xf32, #tpu.memory_space<vmem>>, vector<4x1xf32>
      %426 = vector.extract_strided_slice %3 {offsets = [0, 0], sizes = [4, 1], strides = [1, 1]} : vector<4x16xf32> to vector<4x1xf32>
      %c0_240 = arith.constant 0 : index
      %c0_241 = arith.constant 0 : index
      %427 = memref.load %arg3[%c0_240, %c0_241] : memref<3x16xf32, #tpu.memory_space<smem>>
      %c1_242 = arith.constant 1 : index
      %c0_243 = arith.constant 0 : index
      %428 = memref.load %arg3[%c1_242, %c0_243] : memref<3x16xf32, #tpu.memory_space<smem>>
      %c2_244 = arith.constant 2 : index
      %c0_245 = arith.constant 0 : index
      %429 = memref.load %arg3[%c2_244, %c0_245] : memref<3x16xf32, #tpu.memory_space<smem>>
      %c0_246 = arith.constant 0 : index
      %c0_247 = arith.constant 0 : index
      %430 = memref.load %arg4[%c0_246, %c0_247] : memref<1x16xf32, #tpu.memory_space<smem>>
      %431 = vector.broadcast %427 : f32 to vector<4x1xf32>
      %432 = arith.mulf %431, %424 : vector<4x1xf32>
      %433 = vector.broadcast %428 : f32 to vector<4x1xf32>
      %434 = arith.mulf %433, %425 : vector<4x1xf32>
      %435 = arith.addf %432, %434 : vector<4x1xf32>
      %436 = vector.broadcast %429 : f32 to vector<4x1xf32>
      %437 = arith.mulf %436, %426 : vector<4x1xf32>
      %438 = arith.addf %435, %437 : vector<4x1xf32>
      %439 = vector.broadcast %430 : f32 to vector<4x1xf32>
      %440 = arith.addf %438, %439 : vector<4x1xf32>
      %cst_248 = arith.constant 0.000000e+00 : f32
      %441 = vector.broadcast %cst_248 : f32 to vector<4x1xf32>
      %442 = arith.maximumf %440, %441 : vector<4x1xf32>
      %c0_249 = arith.constant 0 : index
      %c0_250 = arith.constant 0 : index
      %443 = vector.load %arg8[%c0_249, %c0_250] : memref<4x16xf32, #tpu.memory_space<vmem>>, vector<4x1xf32>
      %444 = arith.maximumf %443, %442 : vector<4x1xf32>
      %c0_251 = arith.constant 0 : index
      %c0_252 = arith.constant 0 : index
      %445 = vector.load %arg8[%c0_251, %c0_252] : memref<4x16xf32, #tpu.memory_space<vmem>>, vector<4x1xf32>
      tpu.vector_store %arg8[%c0_251, %c0_252], %444 {strides = array<i32>} : memref<4x16xf32, #tpu.memory_space<vmem>>, vector<4x1xf32>,
      %c0_253 = arith.constant 0 : index
      %c1_254 = arith.constant 1 : index
      %446 = memref.load %arg3[%c0_253, %c1_254] : memref<3x16xf32, #tpu.memory_space<smem>>
      %c1_255 = arith.constant 1 : index
      %c1_256 = arith.constant 1 : index
      %447 = memref.load %arg3[%c1_255, %c1_256] : memref<3x16xf32, #tpu.memory_space<smem>>
      %c2_257 = arith.constant 2 : index
      %c1_258 = arith.constant 1 : index
      %448 = memref.load %arg3[%c2_257, %c1_258] : memref<3x16xf32, #tpu.memory_space<smem>>
      %c0_259 = arith.constant 0 : index
      %c1_260 = arith.constant 1 : index
      %449 = memref.load %arg4[%c0_259, %c1_260] : memref<1x16xf32, #tpu.memory_space<smem>>
      %450 = vector.broadcast %446 : f32 to vector<4x1xf32>
      %451 = arith.mulf %450, %424 : vector<4x1xf32>
      %452 = vector.broadcast %447 : f32 to vector<4x1xf32>
      %453 = arith.mulf %452, %425 : vector<4x1xf32>
      %454 = arith.addf %451, %453 : vector<4x1xf32>
      %455 = vector.broadcast %448 : f32 to vector<4x1xf32>
      %456 = arith.mulf %455, %426 : vector<4x1xf32>
      %457 = arith.addf %454, %456 : vector<4x1xf32>
      %458 = vector.broadcast %449 : f32 to vector<4x1xf32>
      %459 = arith.addf %457, %458 : vector<4x1xf32>
      %cst_261 = arith.constant 0.000000e+00 : f32
      %460 = vector.broadcast %cst_261 : f32 to vector<4x1xf32>
      %461 = arith.maximumf %459, %460 : vector<4x1xf32>
      %c0_262 = arith.constant 0 : index
      %c1_263 = arith.constant 1 : index
      %462 = vector.load %arg8[%c0_262, %c1_263] : memref<4x16xf32, #tpu.memory_space<vmem>>, vector<4x1xf32>
      %463 = arith.maximumf %462, %461 : vector<4x1xf32>
      %c0_264 = arith.constant 0 : index
      %c1_265 = arith.constant 1 : index
      %464 = vector.load %arg8[%c0_264, %c1_265] : memref<4x16xf32, #tpu.memory_space<vmem>>, vector<4x1xf32>
      tpu.vector_store %arg8[%c0_264, %c1_265], %463 {strides = array<i32>} : memref<4x16xf32, #tpu.memory_space<vmem>>, vector<4x1xf32>,
      %c0_266 = arith.constant 0 : index
      %c2_267 = arith.constant 2 : index
      %465 = memref.load %arg3[%c0_266, %c2_267] : memref<3x16xf32, #tpu.memory_space<smem>>
      %c1_268 = arith.constant 1 : index
      %c2_269 = arith.constant 2 : index
      %466 = memref.load %arg3[%c1_268, %c2_269] : memref<3x16xf32, #tpu.memory_space<smem>>
      %c2_270 = arith.constant 2 : index
      %c2_271 = arith.constant 2 : index
      %467 = memref.load %arg3[%c2_270, %c2_271] : memref<3x16xf32, #tpu.memory_space<smem>>
      %c0_272 = arith.constant 0 : index
      %c2_273 = arith.constant 2 : index
      %468 = memref.load %arg4[%c0_272, %c2_273] : memref<1x16xf32, #tpu.memory_space<smem>>
      %469 = vector.broadcast %465 : f32 to vector<4x1xf32>
      %470 = arith.mulf %469, %424 : vector<4x1xf32>
      %471 = vector.broadcast %466 : f32 to vector<4x1xf32>
      %472 = arith.mulf %471, %425 : vector<4x1xf32>
      %473 = arith.addf %470, %472 : vector<4x1xf32>
      %474 = vector.broadcast %467 : f32 to vector<4x1xf32>
      %475 = arith.mulf %474, %426 : vector<4x1xf32>
      %476 = arith.addf %473, %475 : vector<4x1xf32>
      %477 = vector.broadcast %468 : f32 to vector<4x1xf32>
      %478 = arith.addf %476, %477 : vector<4x1xf32>
      %cst_274 = arith.constant 0.000000e+00 : f32
      %479 = vector.broadcast %cst_274 : f32 to vector<4x1xf32>
      %480 = arith.maximumf %478, %479 : vector<4x1xf32>
      %c0_275 = arith.constant 0 : index
      %c2_276 = arith.constant 2 : index
      %481 = vector.load %arg8[%c0_275, %c2_276] : memref<4x16xf32, #tpu.memory_space<vmem>>, vector<4x1xf32>
      %482 = arith.maximumf %481, %480 : vector<4x1xf32>
      %c0_277 = arith.constant 0 : index
      %c2_278 = arith.constant 2 : index
      %483 = vector.load %arg8[%c0_277, %c2_278] : memref<4x16xf32, #tpu.memory_space<vmem>>, vector<4x1xf32>
      tpu.vector_store %arg8[%c0_277, %c2_278], %482 {strides = array<i32>} : memref<4x16xf32, #tpu.memory_space<vmem>>, vector<4x1xf32>,
      %c0_279 = arith.constant 0 : index
      %c3_280 = arith.constant 3 : index
      %484 = memref.load %arg3[%c0_279, %c3_280] : memref<3x16xf32, #tpu.memory_space<smem>>
      %c1_281 = arith.constant 1 : index
      %c3_282 = arith.constant 3 : index
      %485 = memref.load %arg3[%c1_281, %c3_282] : memref<3x16xf32, #tpu.memory_space<smem>>
      %c2_283 = arith.constant 2 : index
      %c3_284 = arith.constant 3 : index
      %486 = memref.load %arg3[%c2_283, %c3_284] : memref<3x16xf32, #tpu.memory_space<smem>>
      %c0_285 = arith.constant 0 : index
      %c3_286 = arith.constant 3 : index
      %487 = memref.load %arg4[%c0_285, %c3_286] : memref<1x16xf32, #tpu.memory_space<smem>>
      %488 = vector.broadcast %484 : f32 to vector<4x1xf32>
      %489 = arith.mulf %488, %424 : vector<4x1xf32>
      %490 = vector.broadcast %485 : f32 to vector<4x1xf32>
      %491 = arith.mulf %490, %425 : vector<4x1xf32>
      %492 = arith.addf %489, %491 : vector<4x1xf32>
      %493 = vector.broadcast %486 : f32 to vector<4x1xf32>
      %494 = arith.mulf %493, %426 : vector<4x1xf32>
      %495 = arith.addf %492, %494 : vector<4x1xf32>
      %496 = vector.broadcast %487 : f32 to vector<4x1xf32>
      %497 = arith.addf %495, %496 : vector<4x1xf32>
      %cst_287 = arith.constant 0.000000e+00 : f32
      %498 = vector.broadcast %cst_287 : f32 to vector<4x1xf32>
      %499 = arith.maximumf %497, %498 : vector<4x1xf32>
      %c0_288 = arith.constant 0 : index
      %c3_289 = arith.constant 3 : index
      %500 = vector.load %arg8[%c0_288, %c3_289] : memref<4x16xf32, #tpu.memory_space<vmem>>, vector<4x1xf32>
      %501 = arith.maximumf %500, %499 : vector<4x1xf32>
      %c0_290 = arith.constant 0 : index
      %c3_291 = arith.constant 3 : index
      %502 = vector.load %arg8[%c0_290, %c3_291] : memref<4x16xf32, #tpu.memory_space<vmem>>, vector<4x1xf32>
      tpu.vector_store %arg8[%c0_290, %c3_291], %501 {strides = array<i32>} : memref<4x16xf32, #tpu.memory_space<vmem>>, vector<4x1xf32>,
      %c0_292 = arith.constant 0 : index
      %c4_293 = arith.constant 4 : index
      %503 = memref.load %arg3[%c0_292, %c4_293] : memref<3x16xf32, #tpu.memory_space<smem>>
      %c1_294 = arith.constant 1 : index
      %c4_295 = arith.constant 4 : index
      %504 = memref.load %arg3[%c1_294, %c4_295] : memref<3x16xf32, #tpu.memory_space<smem>>
      %c2_296 = arith.constant 2 : index
      %c4_297 = arith.constant 4 : index
      %505 = memref.load %arg3[%c2_296, %c4_297] : memref<3x16xf32, #tpu.memory_space<smem>>
      %c0_298 = arith.constant 0 : index
      %c4_299 = arith.constant 4 : index
      %506 = memref.load %arg4[%c0_298, %c4_299] : memref<1x16xf32, #tpu.memory_space<smem>>
      %507 = vector.broadcast %503 : f32 to vector<4x1xf32>
      %508 = arith.mulf %507, %424 : vector<4x1xf32>
      %509 = vector.broadcast %504 : f32 to vector<4x1xf32>
      %510 = arith.mulf %509, %425 : vector<4x1xf32>
      %511 = arith.addf %508, %510 : vector<4x1xf32>
      %512 = vector.broadcast %505 : f32 to vector<4x1xf32>
      %513 = arith.mulf %512, %426 : vector<4x1xf32>
      %514 = arith.addf %511, %513 : vector<4x1xf32>
      %515 = vector.broadcast %506 : f32 to vector<4x1xf32>
      %516 = arith.addf %514, %515 : vector<4x1xf32>
      %cst_300 = arith.constant 0.000000e+00 : f32
      %517 = vector.broadcast %cst_300 : f32 to vector<4x1xf32>
      %518 = arith.maximumf %516, %517 : vector<4x1xf32>
      %c0_301 = arith.constant 0 : index
      %c4_302 = arith.constant 4 : index
      %519 = vector.load %arg8[%c0_301, %c4_302] : memref<4x16xf32, #tpu.memory_space<vmem>>, vector<4x1xf32>
      %520 = arith.maximumf %519, %518 : vector<4x1xf32>
      %c0_303 = arith.constant 0 : index
      %c4_304 = arith.constant 4 : index
      %521 = vector.load %arg8[%c0_303, %c4_304] : memref<4x16xf32, #tpu.memory_space<vmem>>, vector<4x1xf32>
      tpu.vector_store %arg8[%c0_303, %c4_304], %520 {strides = array<i32>} : memref<4x16xf32, #tpu.memory_space<vmem>>, vector<4x1xf32>,
      %c0_305 = arith.constant 0 : index
      %c5_306 = arith.constant 5 : index
      %522 = memref.load %arg3[%c0_305, %c5_306] : memref<3x16xf32, #tpu.memory_space<smem>>
      %c1_307 = arith.constant 1 : index
      %c5_308 = arith.constant 5 : index
      %523 = memref.load %arg3[%c1_307, %c5_308] : memref<3x16xf32, #tpu.memory_space<smem>>
      %c2_309 = arith.constant 2 : index
      %c5_310 = arith.constant 5 : index
      %524 = memref.load %arg3[%c2_309, %c5_310] : memref<3x16xf32, #tpu.memory_space<smem>>
      %c0_311 = arith.constant 0 : index
      %c5_312 = arith.constant 5 : index
      %525 = memref.load %arg4[%c0_311, %c5_312] : memref<1x16xf32, #tpu.memory_space<smem>>
      %526 = vector.broadcast %522 : f32 to vector<4x1xf32>
      %527 = arith.mulf %526, %424 : vector<4x1xf32>
      %528 = vector.broadcast %523 : f32 to vector<4x1xf32>
      %529 = arith.mulf %528, %425 : vector<4x1xf32>
      %530 = arith.addf %527, %529 : vector<4x1xf32>
      %531 = vector.broadcast %524 : f32 to vector<4x1xf32>
      %532 = arith.mulf %531, %426 : vector<4x1xf32>
      %533 = arith.addf %530, %532 : vector<4x1xf32>
      %534 = vector.broadcast %525 : f32 to vector<4x1xf32>
      %535 = arith.addf %533, %534 : vector<4x1xf32>
      %cst_313 = arith.constant 0.000000e+00 : f32
      %536 = vector.broadcast %cst_313 : f32 to vector<4x1xf32>
      %537 = arith.maximumf %535, %536 : vector<4x1xf32>
      %c0_314 = arith.constant 0 : index
      %c5_315 = arith.constant 5 : index
      %538 = vector.load %arg8[%c0_314, %c5_315] : memref<4x16xf32, #tpu.memory_space<vmem>>, vector<4x1xf32>
      %539 = arith.maximumf %538, %537 : vector<4x1xf32>
      %c0_316 = arith.constant 0 : index
      %c5_317 = arith.constant 5 : index
      %540 = vector.load %arg8[%c0_316, %c5_317] : memref<4x16xf32, #tpu.memory_space<vmem>>, vector<4x1xf32>
      tpu.vector_store %arg8[%c0_316, %c5_317], %539 {strides = array<i32>} : memref<4x16xf32, #tpu.memory_space<vmem>>, vector<4x1xf32>,
      %c0_318 = arith.constant 0 : index
      %c6_319 = arith.constant 6 : index
      %541 = memref.load %arg3[%c0_318, %c6_319] : memref<3x16xf32, #tpu.memory_space<smem>>
      %c1_320 = arith.constant 1 : index
      %c6_321 = arith.constant 6 : index
      %542 = memref.load %arg3[%c1_320, %c6_321] : memref<3x16xf32, #tpu.memory_space<smem>>
      %c2_322 = arith.constant 2 : index
      %c6_323 = arith.constant 6 : index
      %543 = memref.load %arg3[%c2_322, %c6_323] : memref<3x16xf32, #tpu.memory_space<smem>>
      %c0_324 = arith.constant 0 : index
      %c6_325 = arith.constant 6 : index
      %544 = memref.load %arg4[%c0_324, %c6_325] : memref<1x16xf32, #tpu.memory_space<smem>>
      %545 = vector.broadcast %541 : f32 to vector<4x1xf32>
      %546 = arith.mulf %545, %424 : vector<4x1xf32>
      %547 = vector.broadcast %542 : f32 to vector<4x1xf32>
      %548 = arith.mulf %547, %425 : vector<4x1xf32>
      %549 = arith.addf %546, %548 : vector<4x1xf32>
      %550 = vector.broadcast %543 : f32 to vector<4x1xf32>
      %551 = arith.mulf %550, %426 : vector<4x1xf32>
      %552 = arith.addf %549, %551 : vector<4x1xf32>
      %553 = vector.broadcast %544 : f32 to vector<4x1xf32>
      %554 = arith.addf %552, %553 : vector<4x1xf32>
      %cst_326 = arith.constant 0.000000e+00 : f32
      %555 = vector.broadcast %cst_326 : f32 to vector<4x1xf32>
      %556 = arith.maximumf %554, %555 : vector<4x1xf32>
      %c0_327 = arith.constant 0 : index
      %c6_328 = arith.constant 6 : index
      %557 = vector.load %arg8[%c0_327, %c6_328] : memref<4x16xf32, #tpu.memory_space<vmem>>, vector<4x1xf32>
      %558 = arith.maximumf %557, %556 : vector<4x1xf32>
      %c0_329 = arith.constant 0 : index
      %c6_330 = arith.constant 6 : index
      %559 = vector.load %arg8[%c0_329, %c6_330] : memref<4x16xf32, #tpu.memory_space<vmem>>, vector<4x1xf32>
      tpu.vector_store %arg8[%c0_329, %c6_330], %558 {strides = array<i32>} : memref<4x16xf32, #tpu.memory_space<vmem>>, vector<4x1xf32>,
      %c0_331 = arith.constant 0 : index
      %c7_332 = arith.constant 7 : index
      %560 = memref.load %arg3[%c0_331, %c7_332] : memref<3x16xf32, #tpu.memory_space<smem>>
      %c1_333 = arith.constant 1 : index
      %c7_334 = arith.constant 7 : index
      %561 = memref.load %arg3[%c1_333, %c7_334] : memref<3x16xf32, #tpu.memory_space<smem>>
      %c2_335 = arith.constant 2 : index
      %c7_336 = arith.constant 7 : index
      %562 = memref.load %arg3[%c2_335, %c7_336] : memref<3x16xf32, #tpu.memory_space<smem>>
      %c0_337 = arith.constant 0 : index
      %c7_338 = arith.constant 7 : index
      %563 = memref.load %arg4[%c0_337, %c7_338] : memref<1x16xf32, #tpu.memory_space<smem>>
      %564 = vector.broadcast %560 : f32 to vector<4x1xf32>
      %565 = arith.mulf %564, %424 : vector<4x1xf32>
      %566 = vector.broadcast %561 : f32 to vector<4x1xf32>
      %567 = arith.mulf %566, %425 : vector<4x1xf32>
      %568 = arith.addf %565, %567 : vector<4x1xf32>
      %569 = vector.broadcast %562 : f32 to vector<4x1xf32>
      %570 = arith.mulf %569, %426 : vector<4x1xf32>
      %571 = arith.addf %568, %570 : vector<4x1xf32>
      %572 = vector.broadcast %563 : f32 to vector<4x1xf32>
      %573 = arith.addf %571, %572 : vector<4x1xf32>
      %cst_339 = arith.constant 0.000000e+00 : f32
      %574 = vector.broadcast %cst_339 : f32 to vector<4x1xf32>
      %575 = arith.maximumf %573, %574 : vector<4x1xf32>
      %c0_340 = arith.constant 0 : index
      %c7_341 = arith.constant 7 : index
      %576 = vector.load %arg8[%c0_340, %c7_341] : memref<4x16xf32, #tpu.memory_space<vmem>>, vector<4x1xf32>
      %577 = arith.maximumf %576, %575 : vector<4x1xf32>
      %c0_342 = arith.constant 0 : index
      %c7_343 = arith.constant 7 : index
      %578 = vector.load %arg8[%c0_342, %c7_343] : memref<4x16xf32, #tpu.memory_space<vmem>>, vector<4x1xf32>
      tpu.vector_store %arg8[%c0_342, %c7_343], %577 {strides = array<i32>} : memref<4x16xf32, #tpu.memory_space<vmem>>, vector<4x1xf32>,
      %c0_344 = arith.constant 0 : index
      %c8_345 = arith.constant 8 : index
      %579 = memref.load %arg3[%c0_344, %c8_345] : memref<3x16xf32, #tpu.memory_space<smem>>
      %c1_346 = arith.constant 1 : index
      %c8_347 = arith.constant 8 : index
      %580 = memref.load %arg3[%c1_346, %c8_347] : memref<3x16xf32, #tpu.memory_space<smem>>
      %c2_348 = arith.constant 2 : index
      %c8_349 = arith.constant 8 : index
      %581 = memref.load %arg3[%c2_348, %c8_349] : memref<3x16xf32, #tpu.memory_space<smem>>
      %c0_350 = arith.constant 0 : index
      %c8_351 = arith.constant 8 : index
      %582 = memref.load %arg4[%c0_350, %c8_351] : memref<1x16xf32, #tpu.memory_space<smem>>
      %583 = vector.broadcast %579 : f32 to vector<4x1xf32>
      %584 = arith.mulf %583, %424 : vector<4x1xf32>
      %585 = vector.broadcast %580 : f32 to vector<4x1xf32>
      %586 = arith.mulf %585, %425 : vector<4x1xf32>
      %587 = arith.addf %584, %586 : vector<4x1xf32>
      %588 = vector.broadcast %581 : f32 to vector<4x1xf32>
      %589 = arith.mulf %588, %426 : vector<4x1xf32>
      %590 = arith.addf %587, %589 : vector<4x1xf32>
      %591 = vector.broadcast %582 : f32 to vector<4x1xf32>
      %592 = arith.addf %590, %591 : vector<4x1xf32>
      %cst_352 = arith.constant 0.000000e+00 : f32
      %593 = vector.broadcast %cst_352 : f32 to vector<4x1xf32>
      %594 = arith.maximumf %592, %593 : vector<4x1xf32>
      %c0_353 = arith.constant 0 : index
      %c8_354 = arith.constant 8 : index
      %595 = vector.load %arg8[%c0_353, %c8_354] : memref<4x16xf32, #tpu.memory_space<vmem>>, vector<4x1xf32>
      %596 = arith.maximumf %595, %594 : vector<4x1xf32>
      %c0_355 = arith.constant 0 : index
      %c8_356 = arith.constant 8 : index
      %597 = vector.load %arg8[%c0_355, %c8_356] : memref<4x16xf32, #tpu.memory_space<vmem>>, vector<4x1xf32>
      tpu.vector_store %arg8[%c0_355, %c8_356], %596 {strides = array<i32>} : memref<4x16xf32, #tpu.memory_space<vmem>>, vector<4x1xf32>,
      %c0_357 = arith.constant 0 : index
      %c9_358 = arith.constant 9 : index
      %598 = memref.load %arg3[%c0_357, %c9_358] : memref<3x16xf32, #tpu.memory_space<smem>>
      %c1_359 = arith.constant 1 : index
      %c9_360 = arith.constant 9 : index
      %599 = memref.load %arg3[%c1_359, %c9_360] : memref<3x16xf32, #tpu.memory_space<smem>>
      %c2_361 = arith.constant 2 : index
      %c9_362 = arith.constant 9 : index
      %600 = memref.load %arg3[%c2_361, %c9_362] : memref<3x16xf32, #tpu.memory_space<smem>>
      %c0_363 = arith.constant 0 : index
      %c9_364 = arith.constant 9 : index
      %601 = memref.load %arg4[%c0_363, %c9_364] : memref<1x16xf32, #tpu.memory_space<smem>>
      %602 = vector.broadcast %598 : f32 to vector<4x1xf32>
      %603 = arith.mulf %602, %424 : vector<4x1xf32>
      %604 = vector.broadcast %599 : f32 to vector<4x1xf32>
      %605 = arith.mulf %604, %425 : vector<4x1xf32>
      %606 = arith.addf %603, %605 : vector<4x1xf32>
      %607 = vector.broadcast %600 : f32 to vector<4x1xf32>
      %608 = arith.mulf %607, %426 : vector<4x1xf32>
      %609 = arith.addf %606, %608 : vector<4x1xf32>
      %610 = vector.broadcast %601 : f32 to vector<4x1xf32>
      %611 = arith.addf %609, %610 : vector<4x1xf32>
      %cst_365 = arith.constant 0.000000e+00 : f32
      %612 = vector.broadcast %cst_365 : f32 to vector<4x1xf32>
      %613 = arith.maximumf %611, %612 : vector<4x1xf32>
      %c0_366 = arith.constant 0 : index
      %c9_367 = arith.constant 9 : index
      %614 = vector.load %arg8[%c0_366, %c9_367] : memref<4x16xf32, #tpu.memory_space<vmem>>, vector<4x1xf32>
      %615 = arith.maximumf %614, %613 : vector<4x1xf32>
      %c0_368 = arith.constant 0 : index
      %c9_369 = arith.constant 9 : index
      %616 = vector.load %arg8[%c0_368, %c9_369] : memref<4x16xf32, #tpu.memory_space<vmem>>, vector<4x1xf32>
      tpu.vector_store %arg8[%c0_368, %c9_369], %615 {strides = array<i32>} : memref<4x16xf32, #tpu.memory_space<vmem>>, vector<4x1xf32>,
      %c0_370 = arith.constant 0 : index
      %c10_371 = arith.constant 10 : index
      %617 = memref.load %arg3[%c0_370, %c10_371] : memref<3x16xf32, #tpu.memory_space<smem>>
      %c1_372 = arith.constant 1 : index
      %c10_373 = arith.constant 10 : index
      %618 = memref.load %arg3[%c1_372, %c10_373] : memref<3x16xf32, #tpu.memory_space<smem>>
      %c2_374 = arith.constant 2 : index
      %c10_375 = arith.constant 10 : index
      %619 = memref.load %arg3[%c2_374, %c10_375] : memref<3x16xf32, #tpu.memory_space<smem>>
      %c0_376 = arith.constant 0 : index
      %c10_377 = arith.constant 10 : index
      %620 = memref.load %arg4[%c0_376, %c10_377] : memref<1x16xf32, #tpu.memory_space<smem>>
      %621 = vector.broadcast %617 : f32 to vector<4x1xf32>
      %622 = arith.mulf %621, %424 : vector<4x1xf32>
      %623 = vector.broadcast %618 : f32 to vector<4x1xf32>
      %624 = arith.mulf %623, %425 : vector<4x1xf32>
      %625 = arith.addf %622, %624 : vector<4x1xf32>
      %626 = vector.broadcast %619 : f32 to vector<4x1xf32>
      %627 = arith.mulf %626, %426 : vector<4x1xf32>
      %628 = arith.addf %625, %627 : vector<4x1xf32>
      %629 = vector.broadcast %620 : f32 to vector<4x1xf32>
      %630 = arith.addf %628, %629 : vector<4x1xf32>
      %cst_378 = arith.constant 0.000000e+00 : f32
      %631 = vector.broadcast %cst_378 : f32 to vector<4x1xf32>
      %632 = arith.maximumf %630, %631 : vector<4x1xf32>
      %c0_379 = arith.constant 0 : index
      %c10_380 = arith.constant 10 : index
      %633 = vector.load %arg8[%c0_379, %c10_380] : memref<4x16xf32, #tpu.memory_space<vmem>>, vector<4x1xf32>
      %634 = arith.maximumf %633, %632 : vector<4x1xf32>
      %c0_381 = arith.constant 0 : index
      %c10_382 = arith.constant 10 : index
      %635 = vector.load %arg8[%c0_381, %c10_382] : memref<4x16xf32, #tpu.memory_space<vmem>>, vector<4x1xf32>
      tpu.vector_store %arg8[%c0_381, %c10_382], %634 {strides = array<i32>} : memref<4x16xf32, #tpu.memory_space<vmem>>, vector<4x1xf32>,
      %c0_383 = arith.constant 0 : index
      %c11_384 = arith.constant 11 : index
      %636 = memref.load %arg3[%c0_383, %c11_384] : memref<3x16xf32, #tpu.memory_space<smem>>
      %c1_385 = arith.constant 1 : index
      %c11_386 = arith.constant 11 : index
      %637 = memref.load %arg3[%c1_385, %c11_386] : memref<3x16xf32, #tpu.memory_space<smem>>
      %c2_387 = arith.constant 2 : index
      %c11_388 = arith.constant 11 : index
      %638 = memref.load %arg3[%c2_387, %c11_388] : memref<3x16xf32, #tpu.memory_space<smem>>
      %c0_389 = arith.constant 0 : index
      %c11_390 = arith.constant 11 : index
      %639 = memref.load %arg4[%c0_389, %c11_390] : memref<1x16xf32, #tpu.memory_space<smem>>
      %640 = vector.broadcast %636 : f32 to vector<4x1xf32>
      %641 = arith.mulf %640, %424 : vector<4x1xf32>
      %642 = vector.broadcast %637 : f32 to vector<4x1xf32>
      %643 = arith.mulf %642, %425 : vector<4x1xf32>
      %644 = arith.addf %641, %643 : vector<4x1xf32>
      %645 = vector.broadcast %638 : f32 to vector<4x1xf32>
      %646 = arith.mulf %645, %426 : vector<4x1xf32>
      %647 = arith.addf %644, %646 : vector<4x1xf32>
      %648 = vector.broadcast %639 : f32 to vector<4x1xf32>
      %649 = arith.addf %647, %648 : vector<4x1xf32>
      %cst_391 = arith.constant 0.000000e+00 : f32
      %650 = vector.broadcast %cst_391 : f32 to vector<4x1xf32>
      %651 = arith.maximumf %649, %650 : vector<4x1xf32>
      %c0_392 = arith.constant 0 : index
      %c11_393 = arith.constant 11 : index
      %652 = vector.load %arg8[%c0_392, %c11_393] : memref<4x16xf32, #tpu.memory_space<vmem>>, vector<4x1xf32>
      %653 = arith.maximumf %652, %651 : vector<4x1xf32>
      %c0_394 = arith.constant 0 : index
      %c11_395 = arith.constant 11 : index
      %654 = vector.load %arg8[%c0_394, %c11_395] : memref<4x16xf32, #tpu.memory_space<vmem>>, vector<4x1xf32>
      tpu.vector_store %arg8[%c0_394, %c11_395], %653 {strides = array<i32>} : memref<4x16xf32, #tpu.memory_space<vmem>>, vector<4x1xf32>,
      %c0_396 = arith.constant 0 : index
      %c12_397 = arith.constant 12 : index
      %655 = memref.load %arg3[%c0_396, %c12_397] : memref<3x16xf32, #tpu.memory_space<smem>>
      %c1_398 = arith.constant 1 : index
      %c12_399 = arith.constant 12 : index
      %656 = memref.load %arg3[%c1_398, %c12_399] : memref<3x16xf32, #tpu.memory_space<smem>>
      %c2_400 = arith.constant 2 : index
      %c12_401 = arith.constant 12 : index
      %657 = memref.load %arg3[%c2_400, %c12_401] : memref<3x16xf32, #tpu.memory_space<smem>>
      %c0_402 = arith.constant 0 : index
      %c12_403 = arith.constant 12 : index
      %658 = memref.load %arg4[%c0_402, %c12_403] : memref<1x16xf32, #tpu.memory_space<smem>>
      %659 = vector.broadcast %655 : f32 to vector<4x1xf32>
      %660 = arith.mulf %659, %424 : vector<4x1xf32>
      %661 = vector.broadcast %656 : f32 to vector<4x1xf32>
      %662 = arith.mulf %661, %425 : vector<4x1xf32>
      %663 = arith.addf %660, %662 : vector<4x1xf32>
      %664 = vector.broadcast %657 : f32 to vector<4x1xf32>
      %665 = arith.mulf %664, %426 : vector<4x1xf32>
      %666 = arith.addf %663, %665 : vector<4x1xf32>
      %667 = vector.broadcast %658 : f32 to vector<4x1xf32>
      %668 = arith.addf %666, %667 : vector<4x1xf32>
      %cst_404 = arith.constant 0.000000e+00 : f32
      %669 = vector.broadcast %cst_404 : f32 to vector<4x1xf32>
      %670 = arith.maximumf %668, %669 : vector<4x1xf32>
      %c0_405 = arith.constant 0 : index
      %c12_406 = arith.constant 12 : index
      %671 = vector.load %arg8[%c0_405, %c12_406] : memref<4x16xf32, #tpu.memory_space<vmem>>, vector<4x1xf32>
      %672 = arith.maximumf %671, %670 : vector<4x1xf32>
      %c0_407 = arith.constant 0 : index
      %c12_408 = arith.constant 12 : index
      %673 = vector.load %arg8[%c0_407, %c12_408] : memref<4x16xf32, #tpu.memory_space<vmem>>, vector<4x1xf32>
      tpu.vector_store %arg8[%c0_407, %c12_408], %672 {strides = array<i32>} : memref<4x16xf32, #tpu.memory_space<vmem>>, vector<4x1xf32>,
      %c0_409 = arith.constant 0 : index
      %c13_410 = arith.constant 13 : index
      %674 = memref.load %arg3[%c0_409, %c13_410] : memref<3x16xf32, #tpu.memory_space<smem>>
      %c1_411 = arith.constant 1 : index
      %c13_412 = arith.constant 13 : index
      %675 = memref.load %arg3[%c1_411, %c13_412] : memref<3x16xf32, #tpu.memory_space<smem>>
      %c2_413 = arith.constant 2 : index
      %c13_414 = arith.constant 13 : index
      %676 = memref.load %arg3[%c2_413, %c13_414] : memref<3x16xf32, #tpu.memory_space<smem>>
      %c0_415 = arith.constant 0 : index
      %c13_416 = arith.constant 13 : index
      %677 = memref.load %arg4[%c0_415, %c13_416] : memref<1x16xf32, #tpu.memory_space<smem>>
      %678 = vector.broadcast %674 : f32 to vector<4x1xf32>
      %679 = arith.mulf %678, %424 : vector<4x1xf32>
      %680 = vector.broadcast %675 : f32 to vector<4x1xf32>
      %681 = arith.mulf %680, %425 : vector<4x1xf32>
      %682 = arith.addf %679, %681 : vector<4x1xf32>
      %683 = vector.broadcast %676 : f32 to vector<4x1xf32>
      %684 = arith.mulf %683, %426 : vector<4x1xf32>
      %685 = arith.addf %682, %684 : vector<4x1xf32>
      %686 = vector.broadcast %677 : f32 to vector<4x1xf32>
      %687 = arith.addf %685, %686 : vector<4x1xf32>
      %cst_417 = arith.constant 0.000000e+00 : f32
      %688 = vector.broadcast %cst_417 : f32 to vector<4x1xf32>
      %689 = arith.maximumf %687, %688 : vector<4x1xf32>
      %c0_418 = arith.constant 0 : index
      %c13_419 = arith.constant 13 : index
      %690 = vector.load %arg8[%c0_418, %c13_419] : memref<4x16xf32, #tpu.memory_space<vmem>>, vector<4x1xf32>
      %691 = arith.maximumf %690, %689 : vector<4x1xf32>
      %c0_420 = arith.constant 0 : index
      %c13_421 = arith.constant 13 : index
      %692 = vector.load %arg8[%c0_420, %c13_421] : memref<4x16xf32, #tpu.memory_space<vmem>>, vector<4x1xf32>
      tpu.vector_store %arg8[%c0_420, %c13_421], %691 {strides = array<i32>} : memref<4x16xf32, #tpu.memory_space<vmem>>, vector<4x1xf32>,
      %c0_422 = arith.constant 0 : index
      %c14_423 = arith.constant 14 : index
      %693 = memref.load %arg3[%c0_422, %c14_423] : memref<3x16xf32, #tpu.memory_space<smem>>
      %c1_424 = arith.constant 1 : index
      %c14_425 = arith.constant 14 : index
      %694 = memref.load %arg3[%c1_424, %c14_425] : memref<3x16xf32, #tpu.memory_space<smem>>
      %c2_426 = arith.constant 2 : index
      %c14_427 = arith.constant 14 : index
      %695 = memref.load %arg3[%c2_426, %c14_427] : memref<3x16xf32, #tpu.memory_space<smem>>
      %c0_428 = arith.constant 0 : index
      %c14_429 = arith.constant 14 : index
      %696 = memref.load %arg4[%c0_428, %c14_429] : memref<1x16xf32, #tpu.memory_space<smem>>
      %697 = vector.broadcast %693 : f32 to vector<4x1xf32>
      %698 = arith.mulf %697, %424 : vector<4x1xf32>
      %699 = vector.broadcast %694 : f32 to vector<4x1xf32>
      %700 = arith.mulf %699, %425 : vector<4x1xf32>
      %701 = arith.addf %698, %700 : vector<4x1xf32>
      %702 = vector.broadcast %695 : f32 to vector<4x1xf32>
      %703 = arith.mulf %702, %426 : vector<4x1xf32>
      %704 = arith.addf %701, %703 : vector<4x1xf32>
      %705 = vector.broadcast %696 : f32 to vector<4x1xf32>
      %706 = arith.addf %704, %705 : vector<4x1xf32>
      %cst_430 = arith.constant 0.000000e+00 : f32
      %707 = vector.broadcast %cst_430 : f32 to vector<4x1xf32>
      %708 = arith.maximumf %706, %707 : vector<4x1xf32>
      %c0_431 = arith.constant 0 : index
      %c14_432 = arith.constant 14 : index
      %709 = vector.load %arg8[%c0_431, %c14_432] : memref<4x16xf32, #tpu.memory_space<vmem>>, vector<4x1xf32>
      %710 = arith.maximumf %709, %708 : vector<4x1xf32>
      %c0_433 = arith.constant 0 : index
      %c14_434 = arith.constant 14 : index
      %711 = vector.load %arg8[%c0_433, %c14_434] : memref<4x16xf32, #tpu.memory_space<vmem>>, vector<4x1xf32>
      tpu.vector_store %arg8[%c0_433, %c14_434], %710 {strides = array<i32>} : memref<4x16xf32, #tpu.memory_space<vmem>>, vector<4x1xf32>,
      %c0_435 = arith.constant 0 : index
      %c15_436 = arith.constant 15 : index
      %712 = memref.load %arg3[%c0_435, %c15_436] : memref<3x16xf32, #tpu.memory_space<smem>>
      %c1_437 = arith.constant 1 : index
      %c15_438 = arith.constant 15 : index
      %713 = memref.load %arg3[%c1_437, %c15_438] : memref<3x16xf32, #tpu.memory_space<smem>>
      %c2_439 = arith.constant 2 : index
      %c15_440 = arith.constant 15 : index
      %714 = memref.load %arg3[%c2_439, %c15_440] : memref<3x16xf32, #tpu.memory_space<smem>>
      %c0_441 = arith.constant 0 : index
      %c15_442 = arith.constant 15 : index
      %715 = memref.load %arg4[%c0_441, %c15_442] : memref<1x16xf32, #tpu.memory_space<smem>>
      %716 = vector.broadcast %712 : f32 to vector<4x1xf32>
      %717 = arith.mulf %716, %424 : vector<4x1xf32>
      %718 = vector.broadcast %713 : f32 to vector<4x1xf32>
      %719 = arith.mulf %718, %425 : vector<4x1xf32>
      %720 = arith.addf %717, %719 : vector<4x1xf32>
      %721 = vector.broadcast %714 : f32 to vector<4x1xf32>
      %722 = arith.mulf %721, %426 : vector<4x1xf32>
      %723 = arith.addf %720, %722 : vector<4x1xf32>
      %724 = vector.broadcast %715 : f32 to vector<4x1xf32>
      %725 = arith.addf %723, %724 : vector<4x1xf32>
      %cst_443 = arith.constant 0.000000e+00 : f32
      %726 = vector.broadcast %cst_443 : f32 to vector<4x1xf32>
      %727 = arith.maximumf %725, %726 : vector<4x1xf32>
      %c0_444 = arith.constant 0 : index
      %c15_445 = arith.constant 15 : index
      %728 = vector.load %arg8[%c0_444, %c15_445] : memref<4x16xf32, #tpu.memory_space<vmem>>, vector<4x1xf32>
      %729 = arith.maximumf %728, %727 : vector<4x1xf32>
      %c0_446 = arith.constant 0 : index
      %c15_447 = arith.constant 15 : index
      %730 = vector.load %arg8[%c0_446, %c15_447] : memref<4x16xf32, #tpu.memory_space<vmem>>, vector<4x1xf32>
      tpu.vector_store %arg8[%c0_446, %c15_447], %729 {strides = array<i32>} : memref<4x16xf32, #tpu.memory_space<vmem>>, vector<4x1xf32>,
    } else {
    }
    %cst = arith.constant 0.000000e+00 : f32
    %7 = vector.broadcast %cst : f32 to vector<4x1xf32>
    %c0_4 = arith.constant 0 : index
    %c1 = arith.constant 1 : index
    %8 = vector.load %arg9[%c0_4, %c1] : memref<4x2xf32, #tpu.memory_space<vmem>>, vector<4x1xf32>
    %9 = vector.extract_strided_slice %3 {offsets = [0, 0], sizes = [4, 15], strides = [1, 1]} : vector<4x16xf32> to vector<4x15xf32>
    %10 = tpu.concatenate %8, %9 in 1 : vector<4x1xf32>, vector<4x15xf32> -> vector<4x16xf32>
    %11 = vector.extract_strided_slice %3 {offsets = [0, 1], sizes = [4, 15], strides = [1, 1]} : vector<4x16xf32> to vector<4x15xf32>
    %12 = tpu.concatenate %11, %7 in 1 : vector<4x15xf32>, vector<4x1xf32> -> vector<4x16xf32>
    %13 = tpu.iota {dimensions = array<i32: 1>} : vector<1x16xi32>
    %c15_i32 = arith.constant 15 : i32
    %14 = vector.broadcast %c15_i32 : i32 to vector<1x16xi32>
    %15 = arith.cmpi slt, %13, %14 : vector<1x16xi32>
    %c0_i32_5 = arith.constant 0 : i32
    %16 = arith.cmpi eq, %arg1, %c0_i32_5 : i32
    %17 = vector.broadcast %16 : i1 to vector<1x16xi1>
    %18 = arith.ori %15, %17 : vector<1x16xi1>
    %c0_6 = arith.constant 0 : index
    %c0_7 = arith.constant 0 : index
    %19 = memref.load %arg3[%c0_6, %c0_7] : memref<3x16xf32, #tpu.memory_space<smem>>
    %c1_8 = arith.constant 1 : index
    %c0_9 = arith.constant 0 : index
    %20 = memref.load %arg3[%c1_8, %c0_9] : memref<3x16xf32, #tpu.memory_space<smem>>
    %c2 = arith.constant 2 : index
    %c0_10 = arith.constant 0 : index
    %21 = memref.load %arg3[%c2, %c0_10] : memref<3x16xf32, #tpu.memory_space<smem>>
    %c0_11 = arith.constant 0 : index
    %c0_12 = arith.constant 0 : index
    %22 = memref.load %arg4[%c0_11, %c0_12] : memref<1x16xf32, #tpu.memory_space<smem>>
    %23 = vector.broadcast %19 : f32 to vector<4x16xf32>
    %24 = arith.mulf %23, %10 : vector<4x16xf32>
    %25 = vector.broadcast %20 : f32 to vector<4x16xf32>
    %26 = arith.mulf %25, %3 : vector<4x16xf32>
    %27 = arith.addf %24, %26 : vector<4x16xf32>
    %28 = vector.broadcast %21 : f32 to vector<4x16xf32>
    %29 = arith.mulf %28, %12 : vector<4x16xf32>
    %30 = arith.addf %27, %29 : vector<4x16xf32>
    %31 = vector.broadcast %22 : f32 to vector<4x16xf32>
    %32 = arith.addf %30, %31 : vector<4x16xf32>
    %cst_13 = arith.constant 0.000000e+00 : f32
    %33 = vector.broadcast %cst_13 : f32 to vector<4x16xf32>
    %34 = arith.maximumf %32, %33 : vector<4x16xf32>
    %cst_14 = arith.constant 0.000000e+00 : f32
    %35 = vector.shape_cast %18 : vector<1x16xi1> to vector<1x16xi1>
    %36 = vector.broadcast %35 : vector<1x16xi1> to vector<4x16xi1>
    %37 = vector.broadcast %cst_14 : f32 to vector<4x16xf32>
    %38 = arith.select %36, %34, %37 : vector<4x16xi1>, vector<4x16xf32>
    %cst_15 = arith.constant dense<0xFF800000> : vector<4xf32>
    %39 = vector.multi_reduction <maximumf>, %38, %cst_15 [1] : vector<4x16xf32> to vector<4xf32>
    %40 = vector.shape_cast %39 : vector<4xf32> to vector<4x1xf32>
    %c0_16 = arith.constant 0 : index
    %c0_17 = arith.constant 0 : index
    %41 = vector.load %arg8[%c0_16, %c0_17] : memref<4x16xf32, #tpu.memory_space<vmem>>, vector<4x1xf32>
    %42 = arith.maximumf %41, %40 : vector<4x1xf32>
    %c0_18 = arith.constant 0 : index
    %c0_19 = arith.constant 0 : index
    %43 = vector.load %arg8[%c0_18, %c0_19] : memref<4x16xf32, #tpu.memory_space<vmem>>, vector<4x1xf32>
    tpu.vector_store %arg8[%c0_18, %c0_19], %42 {strides = array<i32>} : memref<4x16xf32, #tpu.memory_space<vmem>>, vector<4x1xf32>,
    %c0_20 = arith.constant 0 : index
    %c1_21 = arith.constant 1 : index
    %44 = memref.load %arg3[%c0_20, %c1_21] : memref<3x16xf32, #tpu.memory_space<smem>>
    %c1_22 = arith.constant 1 : index
    %c1_23 = arith.constant 1 : index
    %45 = memref.load %arg3[%c1_22, %c1_23] : memref<3x16xf32, #tpu.memory_space<smem>>
    %c2_24 = arith.constant 2 : index
    %c1_25 = arith.constant 1 : index
    %46 = memref.load %arg3[%c2_24, %c1_25] : memref<3x16xf32, #tpu.memory_space<smem>>
    %c0_26 = arith.constant 0 : index
    %c1_27 = arith.constant 1 : index
    %47 = memref.load %arg4[%c0_26, %c1_27] : memref<1x16xf32, #tpu.memory_space<smem>>
    %48 = vector.broadcast %44 : f32 to vector<4x16xf32>
    %49 = arith.mulf %48, %10 : vector<4x16xf32>
    %50 = vector.broadcast %45 : f32 to vector<4x16xf32>
    %51 = arith.mulf %50, %3 : vector<4x16xf32>
    %52 = arith.addf %49, %51 : vector<4x16xf32>
    %53 = vector.broadcast %46 : f32 to vector<4x16xf32>
    %54 = arith.mulf %53, %12 : vector<4x16xf32>
    %55 = arith.addf %52, %54 : vector<4x16xf32>
    %56 = vector.broadcast %47 : f32 to vector<4x16xf32>
    %57 = arith.addf %55, %56 : vector<4x16xf32>
    %cst_28 = arith.constant 0.000000e+00 : f32
    %58 = vector.broadcast %cst_28 : f32 to vector<4x16xf32>
    %59 = arith.maximumf %57, %58 : vector<4x16xf32>
    %cst_29 = arith.constant 0.000000e+00 : f32
    %60 = vector.shape_cast %18 : vector<1x16xi1> to vector<1x16xi1>
    %61 = vector.broadcast %60 : vector<1x16xi1> to vector<4x16xi1>
    %62 = vector.broadcast %cst_29 : f32 to vector<4x16xf32>
    %63 = arith.select %61, %59, %62 : vector<4x16xi1>, vector<4x16xf32>
    %cst_30 = arith.constant dense<0xFF800000> : vector<4xf32>
    %64 = vector.multi_reduction <maximumf>, %63, %cst_30 [1] : vector<4x16xf32> to vector<4xf32>
    %65 = vector.shape_cast %64 : vector<4xf32> to vector<4x1xf32>
    %c0_31 = arith.constant 0 : index
    %c1_32 = arith.constant 1 : index
    %66 = vector.load %arg8[%c0_31, %c1_32] : memref<4x16xf32, #tpu.memory_space<vmem>>, vector<4x1xf32>
    %67 = arith.maximumf %66, %65 : vector<4x1xf32>
    %c0_33 = arith.constant 0 : index
    %c1_34 = arith.constant 1 : index
    %68 = vector.load %arg8[%c0_33, %c1_34] : memref<4x16xf32, #tpu.memory_space<vmem>>, vector<4x1xf32>
    tpu.vector_store %arg8[%c0_33, %c1_34], %67 {strides = array<i32>} : memref<4x16xf32, #tpu.memory_space<vmem>>, vector<4x1xf32>,
    %c0_35 = arith.constant 0 : index
    %c2_36 = arith.constant 2 : index
    %69 = memref.load %arg3[%c0_35, %c2_36] : memref<3x16xf32, #tpu.memory_space<smem>>
    %c1_37 = arith.constant 1 : index
    %c2_38 = arith.constant 2 : index
    %70 = memref.load %arg3[%c1_37, %c2_38] : memref<3x16xf32, #tpu.memory_space<smem>>
    %c2_39 = arith.constant 2 : index
    %c2_40 = arith.constant 2 : index
    %71 = memref.load %arg3[%c2_39, %c2_40] : memref<3x16xf32, #tpu.memory_space<smem>>
    %c0_41 = arith.constant 0 : index
    %c2_42 = arith.constant 2 : index
    %72 = memref.load %arg4[%c0_41, %c2_42] : memref<1x16xf32, #tpu.memory_space<smem>>
    %73 = vector.broadcast %69 : f32 to vector<4x16xf32>
    %74 = arith.mulf %73, %10 : vector<4x16xf32>
    %75 = vector.broadcast %70 : f32 to vector<4x16xf32>
    %76 = arith.mulf %75, %3 : vector<4x16xf32>
    %77 = arith.addf %74, %76 : vector<4x16xf32>
    %78 = vector.broadcast %71 : f32 to vector<4x16xf32>
    %79 = arith.mulf %78, %12 : vector<4x16xf32>
    %80 = arith.addf %77, %79 : vector<4x16xf32>
    %81 = vector.broadcast %72 : f32 to vector<4x16xf32>
    %82 = arith.addf %80, %81 : vector<4x16xf32>
    %cst_43 = arith.constant 0.000000e+00 : f32
    %83 = vector.broadcast %cst_43 : f32 to vector<4x16xf32>
    %84 = arith.maximumf %82, %83 : vector<4x16xf32>
    %cst_44 = arith.constant 0.000000e+00 : f32
    %85 = vector.shape_cast %18 : vector<1x16xi1> to vector<1x16xi1>
    %86 = vector.broadcast %85 : vector<1x16xi1> to vector<4x16xi1>
    %87 = vector.broadcast %cst_44 : f32 to vector<4x16xf32>
    %88 = arith.select %86, %84, %87 : vector<4x16xi1>, vector<4x16xf32>
    %cst_45 = arith.constant dense<0xFF800000> : vector<4xf32>
    %89 = vector.multi_reduction <maximumf>, %88, %cst_45 [1] : vector<4x16xf32> to vector<4xf32>
    %90 = vector.shape_cast %89 : vector<4xf32> to vector<4x1xf32>
    %c0_46 = arith.constant 0 : index
    %c2_47 = arith.constant 2 : index
    %91 = vector.load %arg8[%c0_46, %c2_47] : memref<4x16xf32, #tpu.memory_space<vmem>>, vector<4x1xf32>
    %92 = arith.maximumf %91, %90 : vector<4x1xf32>
    %c0_48 = arith.constant 0 : index
    %c2_49 = arith.constant 2 : index
    %93 = vector.load %arg8[%c0_48, %c2_49] : memref<4x16xf32, #tpu.memory_space<vmem>>, vector<4x1xf32>
    tpu.vector_store %arg8[%c0_48, %c2_49], %92 {strides = array<i32>} : memref<4x16xf32, #tpu.memory_space<vmem>>, vector<4x1xf32>,
    %c0_50 = arith.constant 0 : index
    %c3 = arith.constant 3 : index
    %94 = memref.load %arg3[%c0_50, %c3] : memref<3x16xf32, #tpu.memory_space<smem>>
    %c1_51 = arith.constant 1 : index
    %c3_52 = arith.constant 3 : index
    %95 = memref.load %arg3[%c1_51, %c3_52] : memref<3x16xf32, #tpu.memory_space<smem>>
    %c2_53 = arith.constant 2 : index
    %c3_54 = arith.constant 3 : index
    %96 = memref.load %arg3[%c2_53, %c3_54] : memref<3x16xf32, #tpu.memory_space<smem>>
    %c0_55 = arith.constant 0 : index
    %c3_56 = arith.constant 3 : index
    %97 = memref.load %arg4[%c0_55, %c3_56] : memref<1x16xf32, #tpu.memory_space<smem>>
    %98 = vector.broadcast %94 : f32 to vector<4x16xf32>
    %99 = arith.mulf %98, %10 : vector<4x16xf32>
    %100 = vector.broadcast %95 : f32 to vector<4x16xf32>
    %101 = arith.mulf %100, %3 : vector<4x16xf32>
    %102 = arith.addf %99, %101 : vector<4x16xf32>
    %103 = vector.broadcast %96 : f32 to vector<4x16xf32>
    %104 = arith.mulf %103, %12 : vector<4x16xf32>
    %105 = arith.addf %102, %104 : vector<4x16xf32>
    %106 = vector.broadcast %97 : f32 to vector<4x16xf32>
    %107 = arith.addf %105, %106 : vector<4x16xf32>
    %cst_57 = arith.constant 0.000000e+00 : f32
    %108 = vector.broadcast %cst_57 : f32 to vector<4x16xf32>
    %109 = arith.maximumf %107, %108 : vector<4x16xf32>
    %cst_58 = arith.constant 0.000000e+00 : f32
    %110 = vector.shape_cast %18 : vector<1x16xi1> to vector<1x16xi1>
    %111 = vector.broadcast %110 : vector<1x16xi1> to vector<4x16xi1>
    %112 = vector.broadcast %cst_58 : f32 to vector<4x16xf32>
    %113 = arith.select %111, %109, %112 : vector<4x16xi1>, vector<4x16xf32>
    %cst_59 = arith.constant dense<0xFF800000> : vector<4xf32>
    %114 = vector.multi_reduction <maximumf>, %113, %cst_59 [1] : vector<4x16xf32> to vector<4xf32>
    %115 = vector.shape_cast %114 : vector<4xf32> to vector<4x1xf32>
    %c0_60 = arith.constant 0 : index
    %c3_61 = arith.constant 3 : index
    %116 = vector.load %arg8[%c0_60, %c3_61] : memref<4x16xf32, #tpu.memory_space<vmem>>, vector<4x1xf32>
    %117 = arith.maximumf %116, %115 : vector<4x1xf32>
    %c0_62 = arith.constant 0 : index
    %c3_63 = arith.constant 3 : index
    %118 = vector.load %arg8[%c0_62, %c3_63] : memref<4x16xf32, #tpu.memory_space<vmem>>, vector<4x1xf32>
    tpu.vector_store %arg8[%c0_62, %c3_63], %117 {strides = array<i32>} : memref<4x16xf32, #tpu.memory_space<vmem>>, vector<4x1xf32>,
    %c0_64 = arith.constant 0 : index
    %c4 = arith.constant 4 : index
    %119 = memref.load %arg3[%c0_64, %c4] : memref<3x16xf32, #tpu.memory_space<smem>>
    %c1_65 = arith.constant 1 : index
    %c4_66 = arith.constant 4 : index
    %120 = memref.load %arg3[%c1_65, %c4_66] : memref<3x16xf32, #tpu.memory_space<smem>>
    %c2_67 = arith.constant 2 : index
    %c4_68 = arith.constant 4 : index
    %121 = memref.load %arg3[%c2_67, %c4_68] : memref<3x16xf32, #tpu.memory_space<smem>>
    %c0_69 = arith.constant 0 : index
    %c4_70 = arith.constant 4 : index
    %122 = memref.load %arg4[%c0_69, %c4_70] : memref<1x16xf32, #tpu.memory_space<smem>>
    %123 = vector.broadcast %119 : f32 to vector<4x16xf32>
    %124 = arith.mulf %123, %10 : vector<4x16xf32>
    %125 = vector.broadcast %120 : f32 to vector<4x16xf32>
    %126 = arith.mulf %125, %3 : vector<4x16xf32>
    %127 = arith.addf %124, %126 : vector<4x16xf32>
    %128 = vector.broadcast %121 : f32 to vector<4x16xf32>
    %129 = arith.mulf %128, %12 : vector<4x16xf32>
    %130 = arith.addf %127, %129 : vector<4x16xf32>
    %131 = vector.broadcast %122 : f32 to vector<4x16xf32>
    %132 = arith.addf %130, %131 : vector<4x16xf32>
    %cst_71 = arith.constant 0.000000e+00 : f32
    %133 = vector.broadcast %cst_71 : f32 to vector<4x16xf32>
    %134 = arith.maximumf %132, %133 : vector<4x16xf32>
    %cst_72 = arith.constant 0.000000e+00 : f32
    %135 = vector.shape_cast %18 : vector<1x16xi1> to vector<1x16xi1>
    %136 = vector.broadcast %135 : vector<1x16xi1> to vector<4x16xi1>
    %137 = vector.broadcast %cst_72 : f32 to vector<4x16xf32>
    %138 = arith.select %136, %134, %137 : vector<4x16xi1>, vector<4x16xf32>
    %cst_73 = arith.constant dense<0xFF800000> : vector<4xf32>
    %139 = vector.multi_reduction <maximumf>, %138, %cst_73 [1] : vector<4x16xf32> to vector<4xf32>
    %140 = vector.shape_cast %139 : vector<4xf32> to vector<4x1xf32>
    %c0_74 = arith.constant 0 : index
    %c4_75 = arith.constant 4 : index
    %141 = vector.load %arg8[%c0_74, %c4_75] : memref<4x16xf32, #tpu.memory_space<vmem>>, vector<4x1xf32>
    %142 = arith.maximumf %141, %140 : vector<4x1xf32>
    %c0_76 = arith.constant 0 : index
    %c4_77 = arith.constant 4 : index
    %143 = vector.load %arg8[%c0_76, %c4_77] : memref<4x16xf32, #tpu.memory_space<vmem>>, vector<4x1xf32>
    tpu.vector_store %arg8[%c0_76, %c4_77], %142 {strides = array<i32>} : memref<4x16xf32, #tpu.memory_space<vmem>>, vector<4x1xf32>,
    %c0_78 = arith.constant 0 : index
    %c5 = arith.constant 5 : index
    %144 = memref.load %arg3[%c0_78, %c5] : memref<3x16xf32, #tpu.memory_space<smem>>
    %c1_79 = arith.constant 1 : index
    %c5_80 = arith.constant 5 : index
    %145 = memref.load %arg3[%c1_79, %c5_80] : memref<3x16xf32, #tpu.memory_space<smem>>
    %c2_81 = arith.constant 2 : index
    %c5_82 = arith.constant 5 : index
    %146 = memref.load %arg3[%c2_81, %c5_82] : memref<3x16xf32, #tpu.memory_space<smem>>
    %c0_83 = arith.constant 0 : index
    %c5_84 = arith.constant 5 : index
    %147 = memref.load %arg4[%c0_83, %c5_84] : memref<1x16xf32, #tpu.memory_space<smem>>
    %148 = vector.broadcast %144 : f32 to vector<4x16xf32>
    %149 = arith.mulf %148, %10 : vector<4x16xf32>
    %150 = vector.broadcast %145 : f32 to vector<4x16xf32>
    %151 = arith.mulf %150, %3 : vector<4x16xf32>
    %152 = arith.addf %149, %151 : vector<4x16xf32>
    %153 = vector.broadcast %146 : f32 to vector<4x16xf32>
    %154 = arith.mulf %153, %12 : vector<4x16xf32>
    %155 = arith.addf %152, %154 : vector<4x16xf32>
    %156 = vector.broadcast %147 : f32 to vector<4x16xf32>
    %157 = arith.addf %155, %156 : vector<4x16xf32>
    %cst_85 = arith.constant 0.000000e+00 : f32
    %158 = vector.broadcast %cst_85 : f32 to vector<4x16xf32>
    %159 = arith.maximumf %157, %158 : vector<4x16xf32>
    %cst_86 = arith.constant 0.000000e+00 : f32
    %160 = vector.shape_cast %18 : vector<1x16xi1> to vector<1x16xi1>
    %161 = vector.broadcast %160 : vector<1x16xi1> to vector<4x16xi1>
    %162 = vector.broadcast %cst_86 : f32 to vector<4x16xf32>
    %163 = arith.select %161, %159, %162 : vector<4x16xi1>, vector<4x16xf32>
    %cst_87 = arith.constant dense<0xFF800000> : vector<4xf32>
    %164 = vector.multi_reduction <maximumf>, %163, %cst_87 [1] : vector<4x16xf32> to vector<4xf32>
    %165 = vector.shape_cast %164 : vector<4xf32> to vector<4x1xf32>
    %c0_88 = arith.constant 0 : index
    %c5_89 = arith.constant 5 : index
    %166 = vector.load %arg8[%c0_88, %c5_89] : memref<4x16xf32, #tpu.memory_space<vmem>>, vector<4x1xf32>
    %167 = arith.maximumf %166, %165 : vector<4x1xf32>
    %c0_90 = arith.constant 0 : index
    %c5_91 = arith.constant 5 : index
    %168 = vector.load %arg8[%c0_90, %c5_91] : memref<4x16xf32, #tpu.memory_space<vmem>>, vector<4x1xf32>
    tpu.vector_store %arg8[%c0_90, %c5_91], %167 {strides = array<i32>} : memref<4x16xf32, #tpu.memory_space<vmem>>, vector<4x1xf32>,
    %c0_92 = arith.constant 0 : index
    %c6 = arith.constant 6 : index
    %169 = memref.load %arg3[%c0_92, %c6] : memref<3x16xf32, #tpu.memory_space<smem>>
    %c1_93 = arith.constant 1 : index
    %c6_94 = arith.constant 6 : index
    %170 = memref.load %arg3[%c1_93, %c6_94] : memref<3x16xf32, #tpu.memory_space<smem>>
    %c2_95 = arith.constant 2 : index
    %c6_96 = arith.constant 6 : index
    %171 = memref.load %arg3[%c2_95, %c6_96] : memref<3x16xf32, #tpu.memory_space<smem>>
    %c0_97 = arith.constant 0 : index
    %c6_98 = arith.constant 6 : index
    %172 = memref.load %arg4[%c0_97, %c6_98] : memref<1x16xf32, #tpu.memory_space<smem>>
    %173 = vector.broadcast %169 : f32 to vector<4x16xf32>
    %174 = arith.mulf %173, %10 : vector<4x16xf32>
    %175 = vector.broadcast %170 : f32 to vector<4x16xf32>
    %176 = arith.mulf %175, %3 : vector<4x16xf32>
    %177 = arith.addf %174, %176 : vector<4x16xf32>
    %178 = vector.broadcast %171 : f32 to vector<4x16xf32>
    %179 = arith.mulf %178, %12 : vector<4x16xf32>
    %180 = arith.addf %177, %179 : vector<4x16xf32>
    %181 = vector.broadcast %172 : f32 to vector<4x16xf32>
    %182 = arith.addf %180, %181 : vector<4x16xf32>
    %cst_99 = arith.constant 0.000000e+00 : f32
    %183 = vector.broadcast %cst_99 : f32 to vector<4x16xf32>
    %184 = arith.maximumf %182, %183 : vector<4x16xf32>
    %cst_100 = arith.constant 0.000000e+00 : f32
    %185 = vector.shape_cast %18 : vector<1x16xi1> to vector<1x16xi1>
    %186 = vector.broadcast %185 : vector<1x16xi1> to vector<4x16xi1>
    %187 = vector.broadcast %cst_100 : f32 to vector<4x16xf32>
    %188 = arith.select %186, %184, %187 : vector<4x16xi1>, vector<4x16xf32>
    %cst_101 = arith.constant dense<0xFF800000> : vector<4xf32>
    %189 = vector.multi_reduction <maximumf>, %188, %cst_101 [1] : vector<4x16xf32> to vector<4xf32>
    %190 = vector.shape_cast %189 : vector<4xf32> to vector<4x1xf32>
    %c0_102 = arith.constant 0 : index
    %c6_103 = arith.constant 6 : index
    %191 = vector.load %arg8[%c0_102, %c6_103] : memref<4x16xf32, #tpu.memory_space<vmem>>, vector<4x1xf32>
    %192 = arith.maximumf %191, %190 : vector<4x1xf32>
    %c0_104 = arith.constant 0 : index
    %c6_105 = arith.constant 6 : index
    %193 = vector.load %arg8[%c0_104, %c6_105] : memref<4x16xf32, #tpu.memory_space<vmem>>, vector<4x1xf32>
    tpu.vector_store %arg8[%c0_104, %c6_105], %192 {strides = array<i32>} : memref<4x16xf32, #tpu.memory_space<vmem>>, vector<4x1xf32>,
    %c0_106 = arith.constant 0 : index
    %c7 = arith.constant 7 : index
    %194 = memref.load %arg3[%c0_106, %c7] : memref<3x16xf32, #tpu.memory_space<smem>>
    %c1_107 = arith.constant 1 : index
    %c7_108 = arith.constant 7 : index
    %195 = memref.load %arg3[%c1_107, %c7_108] : memref<3x16xf32, #tpu.memory_space<smem>>
    %c2_109 = arith.constant 2 : index
    %c7_110 = arith.constant 7 : index
    %196 = memref.load %arg3[%c2_109, %c7_110] : memref<3x16xf32, #tpu.memory_space<smem>>
    %c0_111 = arith.constant 0 : index
    %c7_112 = arith.constant 7 : index
    %197 = memref.load %arg4[%c0_111, %c7_112] : memref<1x16xf32, #tpu.memory_space<smem>>
    %198 = vector.broadcast %194 : f32 to vector<4x16xf32>
    %199 = arith.mulf %198, %10 : vector<4x16xf32>
    %200 = vector.broadcast %195 : f32 to vector<4x16xf32>
    %201 = arith.mulf %200, %3 : vector<4x16xf32>
    %202 = arith.addf %199, %201 : vector<4x16xf32>
    %203 = vector.broadcast %196 : f32 to vector<4x16xf32>
    %204 = arith.mulf %203, %12 : vector<4x16xf32>
    %205 = arith.addf %202, %204 : vector<4x16xf32>
    %206 = vector.broadcast %197 : f32 to vector<4x16xf32>
    %207 = arith.addf %205, %206 : vector<4x16xf32>
    %cst_113 = arith.constant 0.000000e+00 : f32
    %208 = vector.broadcast %cst_113 : f32 to vector<4x16xf32>
    %209 = arith.maximumf %207, %208 : vector<4x16xf32>
    %cst_114 = arith.constant 0.000000e+00 : f32
    %210 = vector.shape_cast %18 : vector<1x16xi1> to vector<1x16xi1>
    %211 = vector.broadcast %210 : vector<1x16xi1> to vector<4x16xi1>
    %212 = vector.broadcast %cst_114 : f32 to vector<4x16xf32>
    %213 = arith.select %211, %209, %212 : vector<4x16xi1>, vector<4x16xf32>
    %cst_115 = arith.constant dense<0xFF800000> : vector<4xf32>
    %214 = vector.multi_reduction <maximumf>, %213, %cst_115 [1] : vector<4x16xf32> to vector<4xf32>
    %215 = vector.shape_cast %214 : vector<4xf32> to vector<4x1xf32>
    %c0_116 = arith.constant 0 : index
    %c7_117 = arith.constant 7 : index
    %216 = vector.load %arg8[%c0_116, %c7_117] : memref<4x16xf32, #tpu.memory_space<vmem>>, vector<4x1xf32>
    %217 = arith.maximumf %216, %215 : vector<4x1xf32>
    %c0_118 = arith.constant 0 : index
    %c7_119 = arith.constant 7 : index
    %218 = vector.load %arg8[%c0_118, %c7_119] : memref<4x16xf32, #tpu.memory_space<vmem>>, vector<4x1xf32>
    tpu.vector_store %arg8[%c0_118, %c7_119], %217 {strides = array<i32>} : memref<4x16xf32, #tpu.memory_space<vmem>>, vector<4x1xf32>,
    %c0_120 = arith.constant 0 : index
    %c8 = arith.constant 8 : index
    %219 = memref.load %arg3[%c0_120, %c8] : memref<3x16xf32, #tpu.memory_space<smem>>
    %c1_121 = arith.constant 1 : index
    %c8_122 = arith.constant 8 : index
    %220 = memref.load %arg3[%c1_121, %c8_122] : memref<3x16xf32, #tpu.memory_space<smem>>
    %c2_123 = arith.constant 2 : index
    %c8_124 = arith.constant 8 : index
    %221 = memref.load %arg3[%c2_123, %c8_124] : memref<3x16xf32, #tpu.memory_space<smem>>
    %c0_125 = arith.constant 0 : index
    %c8_126 = arith.constant 8 : index
    %222 = memref.load %arg4[%c0_125, %c8_126] : memref<1x16xf32, #tpu.memory_space<smem>>
    %223 = vector.broadcast %219 : f32 to vector<4x16xf32>
    %224 = arith.mulf %223, %10 : vector<4x16xf32>
    %225 = vector.broadcast %220 : f32 to vector<4x16xf32>
    %226 = arith.mulf %225, %3 : vector<4x16xf32>
    %227 = arith.addf %224, %226 : vector<4x16xf32>
    %228 = vector.broadcast %221 : f32 to vector<4x16xf32>
    %229 = arith.mulf %228, %12 : vector<4x16xf32>
    %230 = arith.addf %227, %229 : vector<4x16xf32>
    %231 = vector.broadcast %222 : f32 to vector<4x16xf32>
    %232 = arith.addf %230, %231 : vector<4x16xf32>
    %cst_127 = arith.constant 0.000000e+00 : f32
    %233 = vector.broadcast %cst_127 : f32 to vector<4x16xf32>
    %234 = arith.maximumf %232, %233 : vector<4x16xf32>
    %cst_128 = arith.constant 0.000000e+00 : f32
    %235 = vector.shape_cast %18 : vector<1x16xi1> to vector<1x16xi1>
    %236 = vector.broadcast %235 : vector<1x16xi1> to vector<4x16xi1>
    %237 = vector.broadcast %cst_128 : f32 to vector<4x16xf32>
    %238 = arith.select %236, %234, %237 : vector<4x16xi1>, vector<4x16xf32>
    %cst_129 = arith.constant dense<0xFF800000> : vector<4xf32>
    %239 = vector.multi_reduction <maximumf>, %238, %cst_129 [1] : vector<4x16xf32> to vector<4xf32>
    %240 = vector.shape_cast %239 : vector<4xf32> to vector<4x1xf32>
    %c0_130 = arith.constant 0 : index
    %c8_131 = arith.constant 8 : index
    %241 = vector.load %arg8[%c0_130, %c8_131] : memref<4x16xf32, #tpu.memory_space<vmem>>, vector<4x1xf32>
    %242 = arith.maximumf %241, %240 : vector<4x1xf32>
    %c0_132 = arith.constant 0 : index
    %c8_133 = arith.constant 8 : index
    %243 = vector.load %arg8[%c0_132, %c8_133] : memref<4x16xf32, #tpu.memory_space<vmem>>, vector<4x1xf32>
    tpu.vector_store %arg8[%c0_132, %c8_133], %242 {strides = array<i32>} : memref<4x16xf32, #tpu.memory_space<vmem>>, vector<4x1xf32>,
    %c0_134 = arith.constant 0 : index
    %c9 = arith.constant 9 : index
    %244 = memref.load %arg3[%c0_134, %c9] : memref<3x16xf32, #tpu.memory_space<smem>>
    %c1_135 = arith.constant 1 : index
    %c9_136 = arith.constant 9 : index
    %245 = memref.load %arg3[%c1_135, %c9_136] : memref<3x16xf32, #tpu.memory_space<smem>>
    %c2_137 = arith.constant 2 : index
    %c9_138 = arith.constant 9 : index
    %246 = memref.load %arg3[%c2_137, %c9_138] : memref<3x16xf32, #tpu.memory_space<smem>>
    %c0_139 = arith.constant 0 : index
    %c9_140 = arith.constant 9 : index
    %247 = memref.load %arg4[%c0_139, %c9_140] : memref<1x16xf32, #tpu.memory_space<smem>>
    %248 = vector.broadcast %244 : f32 to vector<4x16xf32>
    %249 = arith.mulf %248, %10 : vector<4x16xf32>
    %250 = vector.broadcast %245 : f32 to vector<4x16xf32>
    %251 = arith.mulf %250, %3 : vector<4x16xf32>
    %252 = arith.addf %249, %251 : vector<4x16xf32>
    %253 = vector.broadcast %246 : f32 to vector<4x16xf32>
    %254 = arith.mulf %253, %12 : vector<4x16xf32>
    %255 = arith.addf %252, %254 : vector<4x16xf32>
    %256 = vector.broadcast %247 : f32 to vector<4x16xf32>
    %257 = arith.addf %255, %256 : vector<4x16xf32>
    %cst_141 = arith.constant 0.000000e+00 : f32
    %258 = vector.broadcast %cst_141 : f32 to vector<4x16xf32>
    %259 = arith.maximumf %257, %258 : vector<4x16xf32>
    %cst_142 = arith.constant 0.000000e+00 : f32
    %260 = vector.shape_cast %18 : vector<1x16xi1> to vector<1x16xi1>
    %261 = vector.broadcast %260 : vector<1x16xi1> to vector<4x16xi1>
    %262 = vector.broadcast %cst_142 : f32 to vector<4x16xf32>
    %263 = arith.select %261, %259, %262 : vector<4x16xi1>, vector<4x16xf32>
    %cst_143 = arith.constant dense<0xFF800000> : vector<4xf32>
    %264 = vector.multi_reduction <maximumf>, %263, %cst_143 [1] : vector<4x16xf32> to vector<4xf32>
    %265 = vector.shape_cast %264 : vector<4xf32> to vector<4x1xf32>
    %c0_144 = arith.constant 0 : index
    %c9_145 = arith.constant 9 : index
    %266 = vector.load %arg8[%c0_144, %c9_145] : memref<4x16xf32, #tpu.memory_space<vmem>>, vector<4x1xf32>
    %267 = arith.maximumf %266, %265 : vector<4x1xf32>
    %c0_146 = arith.constant 0 : index
    %c9_147 = arith.constant 9 : index
    %268 = vector.load %arg8[%c0_146, %c9_147] : memref<4x16xf32, #tpu.memory_space<vmem>>, vector<4x1xf32>
    tpu.vector_store %arg8[%c0_146, %c9_147], %267 {strides = array<i32>} : memref<4x16xf32, #tpu.memory_space<vmem>>, vector<4x1xf32>,
    %c0_148 = arith.constant 0 : index
    %c10 = arith.constant 10 : index
    %269 = memref.load %arg3[%c0_148, %c10] : memref<3x16xf32, #tpu.memory_space<smem>>
    %c1_149 = arith.constant 1 : index
    %c10_150 = arith.constant 10 : index
    %270 = memref.load %arg3[%c1_149, %c10_150] : memref<3x16xf32, #tpu.memory_space<smem>>
    %c2_151 = arith.constant 2 : index
    %c10_152 = arith.constant 10 : index
    %271 = memref.load %arg3[%c2_151, %c10_152] : memref<3x16xf32, #tpu.memory_space<smem>>
    %c0_153 = arith.constant 0 : index
    %c10_154 = arith.constant 10 : index
    %272 = memref.load %arg4[%c0_153, %c10_154] : memref<1x16xf32, #tpu.memory_space<smem>>
    %273 = vector.broadcast %269 : f32 to vector<4x16xf32>
    %274 = arith.mulf %273, %10 : vector<4x16xf32>
    %275 = vector.broadcast %270 : f32 to vector<4x16xf32>
    %276 = arith.mulf %275, %3 : vector<4x16xf32>
    %277 = arith.addf %274, %276 : vector<4x16xf32>
    %278 = vector.broadcast %271 : f32 to vector<4x16xf32>
    %279 = arith.mulf %278, %12 : vector<4x16xf32>
    %280 = arith.addf %277, %279 : vector<4x16xf32>
    %281 = vector.broadcast %272 : f32 to vector<4x16xf32>
    %282 = arith.addf %280, %281 : vector<4x16xf32>
    %cst_155 = arith.constant 0.000000e+00 : f32
    %283 = vector.broadcast %cst_155 : f32 to vector<4x16xf32>
    %284 = arith.maximumf %282, %283 : vector<4x16xf32>
    %cst_156 = arith.constant 0.000000e+00 : f32
    %285 = vector.shape_cast %18 : vector<1x16xi1> to vector<1x16xi1>
    %286 = vector.broadcast %285 : vector<1x16xi1> to vector<4x16xi1>
    %287 = vector.broadcast %cst_156 : f32 to vector<4x16xf32>
    %288 = arith.select %286, %284, %287 : vector<4x16xi1>, vector<4x16xf32>
    %cst_157 = arith.constant dense<0xFF800000> : vector<4xf32>
    %289 = vector.multi_reduction <maximumf>, %288, %cst_157 [1] : vector<4x16xf32> to vector<4xf32>
    %290 = vector.shape_cast %289 : vector<4xf32> to vector<4x1xf32>
    %c0_158 = arith.constant 0 : index
    %c10_159 = arith.constant 10 : index
    %291 = vector.load %arg8[%c0_158, %c10_159] : memref<4x16xf32, #tpu.memory_space<vmem>>, vector<4x1xf32>
    %292 = arith.maximumf %291, %290 : vector<4x1xf32>
    %c0_160 = arith.constant 0 : index
    %c10_161 = arith.constant 10 : index
    %293 = vector.load %arg8[%c0_160, %c10_161] : memref<4x16xf32, #tpu.memory_space<vmem>>, vector<4x1xf32>
    tpu.vector_store %arg8[%c0_160, %c10_161], %292 {strides = array<i32>} : memref<4x16xf32, #tpu.memory_space<vmem>>, vector<4x1xf32>,
    %c0_162 = arith.constant 0 : index
    %c11 = arith.constant 11 : index
    %294 = memref.load %arg3[%c0_162, %c11] : memref<3x16xf32, #tpu.memory_space<smem>>
    %c1_163 = arith.constant 1 : index
    %c11_164 = arith.constant 11 : index
    %295 = memref.load %arg3[%c1_163, %c11_164] : memref<3x16xf32, #tpu.memory_space<smem>>
    %c2_165 = arith.constant 2 : index
    %c11_166 = arith.constant 11 : index
    %296 = memref.load %arg3[%c2_165, %c11_166] : memref<3x16xf32, #tpu.memory_space<smem>>
    %c0_167 = arith.constant 0 : index
    %c11_168 = arith.constant 11 : index
    %297 = memref.load %arg4[%c0_167, %c11_168] : memref<1x16xf32, #tpu.memory_space<smem>>
    %298 = vector.broadcast %294 : f32 to vector<4x16xf32>
    %299 = arith.mulf %298, %10 : vector<4x16xf32>
    %300 = vector.broadcast %295 : f32 to vector<4x16xf32>
    %301 = arith.mulf %300, %3 : vector<4x16xf32>
    %302 = arith.addf %299, %301 : vector<4x16xf32>
    %303 = vector.broadcast %296 : f32 to vector<4x16xf32>
    %304 = arith.mulf %303, %12 : vector<4x16xf32>
    %305 = arith.addf %302, %304 : vector<4x16xf32>
    %306 = vector.broadcast %297 : f32 to vector<4x16xf32>
    %307 = arith.addf %305, %306 : vector<4x16xf32>
    %cst_169 = arith.constant 0.000000e+00 : f32
    %308 = vector.broadcast %cst_169 : f32 to vector<4x16xf32>
    %309 = arith.maximumf %307, %308 : vector<4x16xf32>
    %cst_170 = arith.constant 0.000000e+00 : f32
    %310 = vector.shape_cast %18 : vector<1x16xi1> to vector<1x16xi1>
    %311 = vector.broadcast %310 : vector<1x16xi1> to vector<4x16xi1>
    %312 = vector.broadcast %cst_170 : f32 to vector<4x16xf32>
    %313 = arith.select %311, %309, %312 : vector<4x16xi1>, vector<4x16xf32>
    %cst_171 = arith.constant dense<0xFF800000> : vector<4xf32>
    %314 = vector.multi_reduction <maximumf>, %313, %cst_171 [1] : vector<4x16xf32> to vector<4xf32>
    %315 = vector.shape_cast %314 : vector<4xf32> to vector<4x1xf32>
    %c0_172 = arith.constant 0 : index
    %c11_173 = arith.constant 11 : index
    %316 = vector.load %arg8[%c0_172, %c11_173] : memref<4x16xf32, #tpu.memory_space<vmem>>, vector<4x1xf32>
    %317 = arith.maximumf %316, %315 : vector<4x1xf32>
    %c0_174 = arith.constant 0 : index
    %c11_175 = arith.constant 11 : index
    %318 = vector.load %arg8[%c0_174, %c11_175] : memref<4x16xf32, #tpu.memory_space<vmem>>, vector<4x1xf32>
    tpu.vector_store %arg8[%c0_174, %c11_175], %317 {strides = array<i32>} : memref<4x16xf32, #tpu.memory_space<vmem>>, vector<4x1xf32>,
    %c0_176 = arith.constant 0 : index
    %c12 = arith.constant 12 : index
    %319 = memref.load %arg3[%c0_176, %c12] : memref<3x16xf32, #tpu.memory_space<smem>>
    %c1_177 = arith.constant 1 : index
    %c12_178 = arith.constant 12 : index
    %320 = memref.load %arg3[%c1_177, %c12_178] : memref<3x16xf32, #tpu.memory_space<smem>>
    %c2_179 = arith.constant 2 : index
    %c12_180 = arith.constant 12 : index
    %321 = memref.load %arg3[%c2_179, %c12_180] : memref<3x16xf32, #tpu.memory_space<smem>>
    %c0_181 = arith.constant 0 : index
    %c12_182 = arith.constant 12 : index
    %322 = memref.load %arg4[%c0_181, %c12_182] : memref<1x16xf32, #tpu.memory_space<smem>>
    %323 = vector.broadcast %319 : f32 to vector<4x16xf32>
    %324 = arith.mulf %323, %10 : vector<4x16xf32>
    %325 = vector.broadcast %320 : f32 to vector<4x16xf32>
    %326 = arith.mulf %325, %3 : vector<4x16xf32>
    %327 = arith.addf %324, %326 : vector<4x16xf32>
    %328 = vector.broadcast %321 : f32 to vector<4x16xf32>
    %329 = arith.mulf %328, %12 : vector<4x16xf32>
    %330 = arith.addf %327, %329 : vector<4x16xf32>
    %331 = vector.broadcast %322 : f32 to vector<4x16xf32>
    %332 = arith.addf %330, %331 : vector<4x16xf32>
    %cst_183 = arith.constant 0.000000e+00 : f32
    %333 = vector.broadcast %cst_183 : f32 to vector<4x16xf32>
    %334 = arith.maximumf %332, %333 : vector<4x16xf32>
    %cst_184 = arith.constant 0.000000e+00 : f32
    %335 = vector.shape_cast %18 : vector<1x16xi1> to vector<1x16xi1>
    %336 = vector.broadcast %335 : vector<1x16xi1> to vector<4x16xi1>
    %337 = vector.broadcast %cst_184 : f32 to vector<4x16xf32>
    %338 = arith.select %336, %334, %337 : vector<4x16xi1>, vector<4x16xf32>
    %cst_185 = arith.constant dense<0xFF800000> : vector<4xf32>
    %339 = vector.multi_reduction <maximumf>, %338, %cst_185 [1] : vector<4x16xf32> to vector<4xf32>
    %340 = vector.shape_cast %339 : vector<4xf32> to vector<4x1xf32>
    %c0_186 = arith.constant 0 : index
    %c12_187 = arith.constant 12 : index
    %341 = vector.load %arg8[%c0_186, %c12_187] : memref<4x16xf32, #tpu.memory_space<vmem>>, vector<4x1xf32>
    %342 = arith.maximumf %341, %340 : vector<4x1xf32>
    %c0_188 = arith.constant 0 : index
    %c12_189 = arith.constant 12 : index
    %343 = vector.load %arg8[%c0_188, %c12_189] : memref<4x16xf32, #tpu.memory_space<vmem>>, vector<4x1xf32>
    tpu.vector_store %arg8[%c0_188, %c12_189], %342 {strides = array<i32>} : memref<4x16xf32, #tpu.memory_space<vmem>>, vector<4x1xf32>,
    %c0_190 = arith.constant 0 : index
    %c13 = arith.constant 13 : index
    %344 = memref.load %arg3[%c0_190, %c13] : memref<3x16xf32, #tpu.memory_space<smem>>
    %c1_191 = arith.constant 1 : index
    %c13_192 = arith.constant 13 : index
    %345 = memref.load %arg3[%c1_191, %c13_192] : memref<3x16xf32, #tpu.memory_space<smem>>
    %c2_193 = arith.constant 2 : index
    %c13_194 = arith.constant 13 : index
    %346 = memref.load %arg3[%c2_193, %c13_194] : memref<3x16xf32, #tpu.memory_space<smem>>
    %c0_195 = arith.constant 0 : index
    %c13_196 = arith.constant 13 : index
    %347 = memref.load %arg4[%c0_195, %c13_196] : memref<1x16xf32, #tpu.memory_space<smem>>
    %348 = vector.broadcast %344 : f32 to vector<4x16xf32>
    %349 = arith.mulf %348, %10 : vector<4x16xf32>
    %350 = vector.broadcast %345 : f32 to vector<4x16xf32>
    %351 = arith.mulf %350, %3 : vector<4x16xf32>
    %352 = arith.addf %349, %351 : vector<4x16xf32>
    %353 = vector.broadcast %346 : f32 to vector<4x16xf32>
    %354 = arith.mulf %353, %12 : vector<4x16xf32>
    %355 = arith.addf %352, %354 : vector<4x16xf32>
    %356 = vector.broadcast %347 : f32 to vector<4x16xf32>
    %357 = arith.addf %355, %356 : vector<4x16xf32>
    %cst_197 = arith.constant 0.000000e+00 : f32
    %358 = vector.broadcast %cst_197 : f32 to vector<4x16xf32>
    %359 = arith.maximumf %357, %358 : vector<4x16xf32>
    %cst_198 = arith.constant 0.000000e+00 : f32
    %360 = vector.shape_cast %18 : vector<1x16xi1> to vector<1x16xi1>
    %361 = vector.broadcast %360 : vector<1x16xi1> to vector<4x16xi1>
    %362 = vector.broadcast %cst_198 : f32 to vector<4x16xf32>
    %363 = arith.select %361, %359, %362 : vector<4x16xi1>, vector<4x16xf32>
    %cst_199 = arith.constant dense<0xFF800000> : vector<4xf32>
    %364 = vector.multi_reduction <maximumf>, %363, %cst_199 [1] : vector<4x16xf32> to vector<4xf32>
    %365 = vector.shape_cast %364 : vector<4xf32> to vector<4x1xf32>
    %c0_200 = arith.constant 0 : index
    %c13_201 = arith.constant 13 : index
    %366 = vector.load %arg8[%c0_200, %c13_201] : memref<4x16xf32, #tpu.memory_space<vmem>>, vector<4x1xf32>
    %367 = arith.maximumf %366, %365 : vector<4x1xf32>
    %c0_202 = arith.constant 0 : index
    %c13_203 = arith.constant 13 : index
    %368 = vector.load %arg8[%c0_202, %c13_203] : memref<4x16xf32, #tpu.memory_space<vmem>>, vector<4x1xf32>
    tpu.vector_store %arg8[%c0_202, %c13_203], %367 {strides = array<i32>} : memref<4x16xf32, #tpu.memory_space<vmem>>, vector<4x1xf32>,
    %c0_204 = arith.constant 0 : index
    %c14 = arith.constant 14 : index
    %369 = memref.load %arg3[%c0_204, %c14] : memref<3x16xf32, #tpu.memory_space<smem>>
    %c1_205 = arith.constant 1 : index
    %c14_206 = arith.constant 14 : index
    %370 = memref.load %arg3[%c1_205, %c14_206] : memref<3x16xf32, #tpu.memory_space<smem>>
    %c2_207 = arith.constant 2 : index
    %c14_208 = arith.constant 14 : index
    %371 = memref.load %arg3[%c2_207, %c14_208] : memref<3x16xf32, #tpu.memory_space<smem>>
    %c0_209 = arith.constant 0 : index
    %c14_210 = arith.constant 14 : index
    %372 = memref.load %arg4[%c0_209, %c14_210] : memref<1x16xf32, #tpu.memory_space<smem>>
    %373 = vector.broadcast %369 : f32 to vector<4x16xf32>
    %374 = arith.mulf %373, %10 : vector<4x16xf32>
    %375 = vector.broadcast %370 : f32 to vector<4x16xf32>
    %376 = arith.mulf %375, %3 : vector<4x16xf32>
    %377 = arith.addf %374, %376 : vector<4x16xf32>
    %378 = vector.broadcast %371 : f32 to vector<4x16xf32>
    %379 = arith.mulf %378, %12 : vector<4x16xf32>
    %380 = arith.addf %377, %379 : vector<4x16xf32>
    %381 = vector.broadcast %372 : f32 to vector<4x16xf32>
    %382 = arith.addf %380, %381 : vector<4x16xf32>
    %cst_211 = arith.constant 0.000000e+00 : f32
    %383 = vector.broadcast %cst_211 : f32 to vector<4x16xf32>
    %384 = arith.maximumf %382, %383 : vector<4x16xf32>
    %cst_212 = arith.constant 0.000000e+00 : f32
    %385 = vector.shape_cast %18 : vector<1x16xi1> to vector<1x16xi1>
    %386 = vector.broadcast %385 : vector<1x16xi1> to vector<4x16xi1>
    %387 = vector.broadcast %cst_212 : f32 to vector<4x16xf32>
    %388 = arith.select %386, %384, %387 : vector<4x16xi1>, vector<4x16xf32>
    %cst_213 = arith.constant dense<0xFF800000> : vector<4xf32>
    %389 = vector.multi_reduction <maximumf>, %388, %cst_213 [1] : vector<4x16xf32> to vector<4xf32>
    %390 = vector.shape_cast %389 : vector<4xf32> to vector<4x1xf32>
    %c0_214 = arith.constant 0 : index
    %c14_215 = arith.constant 14 : index
    %391 = vector.load %arg8[%c0_214, %c14_215] : memref<4x16xf32, #tpu.memory_space<vmem>>, vector<4x1xf32>
    %392 = arith.maximumf %391, %390 : vector<4x1xf32>
    %c0_216 = arith.constant 0 : index
    %c14_217 = arith.constant 14 : index
    %393 = vector.load %arg8[%c0_216, %c14_217] : memref<4x16xf32, #tpu.memory_space<vmem>>, vector<4x1xf32>
    tpu.vector_store %arg8[%c0_216, %c14_217], %392 {strides = array<i32>} : memref<4x16xf32, #tpu.memory_space<vmem>>, vector<4x1xf32>,
    %c0_218 = arith.constant 0 : index
    %c15 = arith.constant 15 : index
    %394 = memref.load %arg3[%c0_218, %c15] : memref<3x16xf32, #tpu.memory_space<smem>>
    %c1_219 = arith.constant 1 : index
    %c15_220 = arith.constant 15 : index
    %395 = memref.load %arg3[%c1_219, %c15_220] : memref<3x16xf32, #tpu.memory_space<smem>>
    %c2_221 = arith.constant 2 : index
    %c15_222 = arith.constant 15 : index
    %396 = memref.load %arg3[%c2_221, %c15_222] : memref<3x16xf32, #tpu.memory_space<smem>>
    %c0_223 = arith.constant 0 : index
    %c15_224 = arith.constant 15 : index
    %397 = memref.load %arg4[%c0_223, %c15_224] : memref<1x16xf32, #tpu.memory_space<smem>>
    %398 = vector.broadcast %394 : f32 to vector<4x16xf32>
    %399 = arith.mulf %398, %10 : vector<4x16xf32>
    %400 = vector.broadcast %395 : f32 to vector<4x16xf32>
    %401 = arith.mulf %400, %3 : vector<4x16xf32>
    %402 = arith.addf %399, %401 : vector<4x16xf32>
    %403 = vector.broadcast %396 : f32 to vector<4x16xf32>
    %404 = arith.mulf %403, %12 : vector<4x16xf32>
    %405 = arith.addf %402, %404 : vector<4x16xf32>
    %406 = vector.broadcast %397 : f32 to vector<4x16xf32>
    %407 = arith.addf %405, %406 : vector<4x16xf32>
    %cst_225 = arith.constant 0.000000e+00 : f32
    %408 = vector.broadcast %cst_225 : f32 to vector<4x16xf32>
    %409 = arith.maximumf %407, %408 : vector<4x16xf32>
    %cst_226 = arith.constant 0.000000e+00 : f32
    %410 = vector.shape_cast %18 : vector<1x16xi1> to vector<1x16xi1>
    %411 = vector.broadcast %410 : vector<1x16xi1> to vector<4x16xi1>
    %412 = vector.broadcast %cst_226 : f32 to vector<4x16xf32>
    %413 = arith.select %411, %409, %412 : vector<4x16xi1>, vector<4x16xf32>
    %cst_227 = arith.constant dense<0xFF800000> : vector<4xf32>
    %414 = vector.multi_reduction <maximumf>, %413, %cst_227 [1] : vector<4x16xf32> to vector<4xf32>
    %415 = vector.shape_cast %414 : vector<4xf32> to vector<4x1xf32>
    %c0_228 = arith.constant 0 : index
    %c15_229 = arith.constant 15 : index
    %416 = vector.load %arg8[%c0_228, %c15_229] : memref<4x16xf32, #tpu.memory_space<vmem>>, vector<4x1xf32>
    %417 = arith.maximumf %416, %415 : vector<4x1xf32>
    %c0_230 = arith.constant 0 : index
    %c15_231 = arith.constant 15 : index
    %418 = vector.load %arg8[%c0_230, %c15_231] : memref<4x16xf32, #tpu.memory_space<vmem>>, vector<4x1xf32>
    tpu.vector_store %arg8[%c0_230, %c15_231], %417 {strides = array<i32>} : memref<4x16xf32, #tpu.memory_space<vmem>>, vector<4x1xf32>,
    %419 = vector.extract_strided_slice %3 {offsets = [0, 14], sizes = [4, 2], strides = [1, 1]} : vector<4x16xf32> to vector<4x2xf32>
    %c0_232 = arith.constant 0 : index
    %c0_233 = arith.constant 0 : index
    %420 = vector.load %arg9[%c0_232, %c0_233] : memref<4x2xf32, #tpu.memory_space<vmem>>, vector<4x2xf32>
    tpu.vector_store %arg9[%c0_232, %c0_233], %419 {strides = array<i32>} : memref<4x2xf32, #tpu.memory_space<vmem>>, vector<4x2xf32>,
    %c0_i32_234 = arith.constant 0 : i32
    %421 = arith.cmpi eq, %arg1, %c0_i32_234 : i32
    %422 = arith.extui %421 : i1 to i32
    %c0_i32_235 = arith.constant 0 : i32
    %423 = arith.cmpi ne, %422, %c0_i32_235 : i32
    scf.if %423 {
      %c0_236 = arith.constant 0 : index
      %c0_237 = arith.constant 0 : index
      %424 = vector.load %arg8[%c0_236, %c0_237] : memref<4x16xf32, #tpu.memory_space<vmem>>, vector<4x16xf32>
      %c0_238 = arith.constant 0 : index
      %c0_239 = arith.constant 0 : index
      %425 = vector.load %arg5[%c0_238, %c0_239] : memref<1x16xf32, #tpu.memory_space<vmem>>, vector<1x16xf32>
      %426 = vector.broadcast %425 : vector<1x16xf32> to vector<4x16xf32>
      %427 = arith.mulf %424, %426 : vector<4x16xf32>
      %cst_240 = arith.constant dense<0.000000e+00> : vector<4xf32>
      %428 = vector.multi_reduction <add>, %427, %cst_240 [1] : vector<4x16xf32> to vector<4xf32>
      %429 = vector.shape_cast %428 : vector<4xf32> to vector<4x1xf32>
      %c0_241 = arith.constant 0 : index
      %c0_242 = arith.constant 0 : index
      %430 = memref.load %arg6[%c0_241, %c0_242] : memref<1x1xf32, #tpu.memory_space<smem>>
      %431 = vector.broadcast %430 : f32 to vector<4x1xf32>
      %432 = arith.addf %429, %431 : vector<4x1xf32>
      %c0_243 = arith.constant 0 : index
      %c0_244 = arith.constant 0 : index
      %433 = vector.load %arg7[%c0_243, %c0_244] : memref<4x1xf32, #tpu.memory_space<vmem>>, vector<4x1xf32>
      tpu.vector_store %arg7[%c0_243, %c0_244], %432 {strides = array<i32>} : memref<4x1xf32, #tpu.memory_space<vmem>>, vector<4x1xf32>,
    } else {
    }
    return
  }
  func.func @transform_0(%arg0: i32, %arg1: i32) -> (i32, i32) {
    %c0_i32 = arith.constant 0 : i32
    return %arg0, %arg1 : i32, i32
  }
  func.func @transform_1(%arg0: i32, %arg1: i32) -> (i32, i32) {
    %c0_i32 = arith.constant 0 : i32
    %c0_i32_0 = arith.constant 0 : i32
    %c0_i32_1 = arith.constant 0 : i32
    return %c0_i32, %c0_i32_0 : i32, i32
  }
  func.func @transform_2(%arg0: i32, %arg1: i32) -> (i32, i32) {
    %c0_i32 = arith.constant 0 : i32
    %c0_i32_0 = arith.constant 0 : i32
    %c0_i32_1 = arith.constant 0 : i32
    return %c0_i32, %c0_i32_0 : i32, i32
  }
  func.func @transform_3(%arg0: i32, %arg1: i32) -> (i32, i32) {
    %c0_i32 = arith.constant 0 : i32
    %c0_i32_0 = arith.constant 0 : i32
    %c0_i32_1 = arith.constant 0 : i32
    return %c0_i32, %c0_i32_0 : i32, i32
  }
  func.func @transform_4(%arg0: i32, %arg1: i32) -> (i32, i32) {
    %c0_i32 = arith.constant 0 : i32
    %c0_i32_0 = arith.constant 0 : i32
    %c0_i32_1 = arith.constant 0 : i32
    return %c0_i32, %c0_i32_0 : i32, i32
  }
  func.func @transform_5(%arg0: i32, %arg1: i32) -> (i32, i32) {
    %c0_i32 = arith.constant 0 : i32
    %c0_i32_0 = arith.constant 0 : i32
    return %arg0, %c0_i32 : i32, i32
  }
}

</mosaic_0001>

<llo_original>
// kernel: tpu_custom_call.1
$region0: #{tpu_custom_call.1}
  #allocation0 [shape = 'u32[]', space=smem, size = 0x4, offset = 0x4, fixed_abs, tag = 'smem constant byte address 0x4 - core index']
  #allocation1 [shape = 'u32[144,128]{1,0:T(1,128)}', space=vmem, size = 0x12000, scoped, tag = 'internal scratch']
  #allocation2 [shape = 'f32[4,16]{1,0:T(4,128)}', space=vmem, size = 0x800, scoped, tag = 'scratch operand']
  #allocation3 [shape = 'f32[4,2]{1,0:T(4,128)}', space=vmem, size = 0x800, scoped, tag = 'scratch operand']
  #allocation4 [shape = 'f32[1,1]{1,0:T(1,128)S(6)}', space=smem, size = 0x200, scoped, tag = 'scoped memory for tpu_custom_call.1']
  %s0 = inlined_call_operand.hbm [shape: f32[4,16], index: 0, kind: input, shape index: {}]
  %s1 = inlined_call_operand.vmem [shape: f32[3,16], index: 1, kind: input, shape index: {}]
  %s2 = inlined_call_operand.vmem [shape: f32[1,16], index: 2, kind: input, shape index: {}]
  %s3 = inlined_call_operand.vmem [shape: f32[1,16], index: 3, kind: input, shape index: {}]
  %s4 = inlined_call_operand.<no memory space> [shape: f32[1,1], index: 4, kind: input, shape index: {}]
  %s5 = inlined_call_operand.vmem [shape: f32[4,1], index: 5, kind: output, shape index: {}]
  %s6 = sld [smem:[#allocation0]]
  $region54: #{tpu_custom_call.1} parent=0
    _
  %s8 = ssub.s32 1, %s6
  %s9 = scalar_select 0, %s8, %s6
  %10 = sst [smem:[#allocation4]] %s4
  $region1: #{tpu_custom_call.1} parent=0
    #allocation5 [shape = 'u8[2048]{0}', space=vmem, size = 0x800, scoped, tag = 'input window, operand 0, single buffered']
    #allocation6 [shape = 's32[1]{0}', space=sflag, size = 0x4, scoped, tag = 'scoped memory for tpu_custom_call.1']
    #allocation7 [shape = 's32[1]{0}', space=sflag, size = 0x4, scoped, tag = 'scoped memory for tpu_custom_call.1']
    #allocation8 [shape = 'u8[2048]{0}', space=smem, size = 0x800, scoped, tag = 'input window, operand 1, single buffered']
    #allocation9 [shape = 'u8[512]{0}', space=smem, size = 0x200, scoped, tag = 'input window, operand 2, single buffered']
    #allocation10 [shape = 's32[1]{0}', space=sflag, size = 0x4, scoped, tag = 'scoped memory for tpu_custom_call.1']
    %11 = vsyncpa [#allocation6], 0
    %12 = vsyncpa [#allocation7], 0
    %13 = vsyncpa [#allocation10], 0
    // Predicated region
    $region2: #{tpu_custom_call.1} parent=1 // pred_check
      _
    $region3: #{tpu_custom_call.1} parent=1 // pred_check_branch
      %15 = sbr.rel (0) target = $region5
    $region4: #{tpu_custom_call.1} parent=1 // pred_region
      %s17 = ssub.s32 64, 64
      %18 = vsyncadd [#allocation6], %s17
      %s20 = sshll.u32 [#allocation5], 4
      %s21 = int_to_ptr.vmem [resolvable:$true] %s20
      %23 = dma.hbm_to_vmem [thread:$0]  %s0, 64, %s21, [#allocation6]
    $region5: #{tpu_custom_call.1} parent=1 // pred_fallthru
      _
    // Predicated region
    $region6: #{tpu_custom_call.1} parent=1 // pred_check
      _
    $region7: #{tpu_custom_call.1} parent=1 // pred_check_branch
      %25 = sbr.rel (0) target = $region9
    $region8: #{tpu_custom_call.1} parent=1 // pred_region
      %s27 = ssub.s32 64, 64
      %28 = vsyncadd [#allocation7], %s27
      %s30 = sshll.u32 %s1, 4
      %s31 = int_to_ptr.vmem [resolvable:$true] %s30
      %33 = dma.vmem_to_smem %s31, 64, [#allocation8], [#allocation7]
    $region9: #{tpu_custom_call.1} parent=1 // pred_fallthru
      _
    // Predicated region
    $region10: #{tpu_custom_call.1} parent=1 // pred_check
      _
    $region11: #{tpu_custom_call.1} parent=1 // pred_check_branch
      %35 = sbr.rel (0) target = $region13
    $region12: #{tpu_custom_call.1} parent=1 // pred_region
      %s37 = ssub.s32 16, 16
      %38 = vsyncadd [#allocation10], %s37
      %s40 = sshll.u32 %s2, 4
      %s41 = int_to_ptr.vmem [resolvable:$true] %s40
      %43 = dma.vmem_to_smem %s41, 16, [#allocation9], [#allocation10]
    $region13: #{tpu_custom_call.1} parent=1 // pred_fallthru
      _
    // Predicated region
    $region14: #{tpu_custom_call.1} parent=1 // pred_check
      _
    $region15: #{tpu_custom_call.1} parent=1 // pred_check_branch
      %45 = sbr.rel (0) target = $region17
    $region16: #{tpu_custom_call.1} parent=1 // pred_region
      _
    $region17: #{tpu_custom_call.1} parent=1 // pred_fallthru
      _
    // Predicated region
    $region18: #{tpu_custom_call.1} parent=1 // pred_check
      _
    $region19: #{tpu_custom_call.1} parent=1 // pred_check_branch
      %47 = sbr.rel (0) target = $region21
    $region20: #{tpu_custom_call.1} parent=1 // pred_region
      _
    $region21: #{tpu_custom_call.1} parent=1 // pred_fallthru
      _
    // Predicated region
    $region22: #{tpu_custom_call.1} parent=1 // pred_check
      _
    $region23: #{tpu_custom_call.1} parent=1 // pred_check_branch
      %49 = sbr.rel (0) target = $region25
    $region24: #{tpu_custom_call.1} parent=1 // pred_region
      %50 = dma.done [#allocation6], 64
    $region25: #{tpu_custom_call.1} parent=1 // pred_fallthru
      _
    // Predicated region
    $region26: #{tpu_custom_call.1} parent=1 // pred_check
      _
    $region27: #{tpu_custom_call.1} parent=1 // pred_check_branch
      %52 = sbr.rel (0) target = $region29
    $region28: #{tpu_custom_call.1} parent=1 // pred_region
      %53 = dma.done [#allocation7], 64
    $region29: #{tpu_custom_call.1} parent=1 // pred_fallthru
      _
    // Predicated region
    $region30: #{tpu_custom_call.1} parent=1 // pred_check
      _
    $region31: #{tpu_custom_call.1} parent=1 // pred_check_branch
      %55 = sbr.rel (0) target = $region33
    $region32: #{tpu_custom_call.1} parent=1 // pred_region
      %56 = dma.done [#allocation10], 16
    $region33: #{tpu_custom_call.1} parent=1 // pred_fallthru
      _
    %57 = sfence
    %p58 = scmp.eq.s32.totalorder 0, 0
    // Predicated region
    $region34: #{tpu_custom_call.1} parent=1 // pred_check
      %p59 = pneg %p58
    $region35: #{tpu_custom_call.1} parent=1 // pred_check_branch
      %61 = sbr.rel (%p59) target = $region37
    $region36: #{tpu_custom_call.1} parent=1 // pred_region
      %vm62 = vcmask 125952
      %63 = vst.msk [vmem:[#allocation2] sm:$0xf] %vm62, 0.0
      %vm64 = vcmask 11264
      %65 = vst.msk [vmem:[#allocation3] sm:$0xf] %vm64, 0.0
    $region37: #{tpu_custom_call.1} parent=1 // pred_fallthru
      _
    %v66 = vld [vmem:[#allocation5] sm:$0xf]
    %p67 = scmp.gt.s32.totalorder 0, 0
    // Predicated region
    $region38: #{tpu_custom_call.1} parent=1 // pred_check
      %p68 = pneg %p67
    $region39: #{tpu_custom_call.1} parent=1 // pred_check_branch
      %70 = sbr.rel (%p68) target = $region41
    $region40: #{tpu_custom_call.1} parent=1 // pred_region
      %v71 = vld [vmem:[#allocation3] sm:$0xf]
      %s72 = sld [smem:[#allocation8]]
      %s73 = sld [smem:[#allocation8 + $0x80]]
      %s74 = sld [smem:[#allocation8 + $0x100]]
      %s75 = sld [smem:[#allocation9]]
      %v76 = vstv %s72
      %v77 = vmul.f32 %v76, %v71
      %v78 = vstv %s73
      %v79 = vmul.f32 %v78, %v71
      %81 = vrot.lane.b32.xlu0 %v79, 127
      %v82 = vpop.permute.xlu0 %81
      %v84 = vadd.f32 %v77, %v82
      %v85 = vstv %s74
      %v86 = vmul.f32 %v85, %v66
      %v87 = vadd.f32 %v84, %v86
      %v88 = vstv %s75
      %v89 = vadd.f32 %v87, %v88
      %v90 = vmax.f32 %v89, 0.0
      %v91 = vld [vmem:[#allocation2] sm:$0xf]
      %v92 = vmax.f32 %v91, %v90
      %vm93 = vcmask 3072
      %94 = vst.msk [vmem:[#allocation2] sm:$0xf] %vm93, %v92
      %s95 = sld [smem:[#allocation8 + $0x1]]
      %s96 = sld [smem:[#allocation8 + $0x81]]
      %s97 = sld [smem:[#allocation8 + $0x101]]
      %s98 = sld [smem:[#allocation9 + $0x1]]
      %v99 = vstv %s95
      %v100 = vmul.f32 %v99, %v71
      %v101 = vstv %s96
      %v102 = vmul.f32 %v101, %v71
      %104 = vrot.lane.b32.xlu0 %v102, 127
      %v105 = vpop.permute.xlu0 %104
      %v107 = vadd.f32 %v100, %v105
      %v108 = vstv %s97
      %v109 = vmul.f32 %v108, %v66
      %v110 = vadd.f32 %v107, %v109
      %v111 = vstv %s98
      %v112 = vadd.f32 %v110, %v111
      %v113 = vmax.f32 %v112, 0.0
      %v114 = vld [vmem:[#allocation2] sm:$0xf]
      %116 = vrot.lane.b32.xlu0 %v113, 1
      %v117 = vpop.permute.xlu0 %116
      %v119 = vmax.f32 %v114, %v117
      %vm120 = vcmask 11272
      %121 = vst.msk [vmem:[#allocation2] sm:$0xf] %vm120, %v119
      %s122 = sld [smem:[#allocation8 + $0x2]]
      %s123 = sld [smem:[#allocation8 + $0x82]]
      %s124 = sld [smem:[#allocation8 + $0x102]]
      %s125 = sld [smem:[#allocation9 + $0x2]]
      %v126 = vstv %s122
      %v127 = vmul.f32 %v126, %v71
      %v128 = vstv %s123
      %v129 = vmul.f32 %v128, %v71
      %131 = vrot.lane.b32.xlu0 %v129, 127
      %v132 = vpop.permute.xlu0 %131
      %v134 = vadd.f32 %v127, %v132
      %v135 = vstv %s124
      %v136 = vmul.f32 %v135, %v66
      %v137 = vadd.f32 %v134, %v136
      %v138 = vstv %s125
      %v139 = vadd.f32 %v137, %v138
      %v140 = vmax.f32 %v139, 0.0
      %v141 = vld [vmem:[#allocation2] sm:$0xf]
      %143 = vrot.lane.b32.xlu0 %v140, 2
      %v144 = vpop.permute.xlu0 %143
      %v146 = vmax.f32 %v141, %v144
      %vm147 = vcmask 19472
      %148 = vst.msk [vmem:[#allocation2] sm:$0xf] %vm147, %v146
      %s149 = sld [smem:[#allocation8 + $0x3]]
      %s150 = sld [smem:[#allocation8 + $0x83]]
      %s151 = sld [smem:[#allocation8 + $0x103]]
      %s152 = sld [smem:[#allocation9 + $0x3]]
      %v153 = vstv %s149
      %v154 = vmul.f32 %v153, %v71
      %v155 = vstv %s150
      %v156 = vmul.f32 %v155, %v71
      %158 = vrot.lane.b32.xlu0 %v156, 127
      %v159 = vpop.permute.xlu0 %158
      %v161 = vadd.f32 %v154, %v159
      %v162 = vstv %s151
      %v163 = vmul.f32 %v162, %v66
      %v164 = vadd.f32 %v161, %v163
      %v165 = vstv %s152
      %v166 = vadd.f32 %v164, %v165
      %v167 = vmax.f32 %v166, 0.0
      %v168 = vld [vmem:[#allocation2] sm:$0xf]
      %170 = vrot.lane.b32.xlu0 %v167, 3
      %v171 = vpop.permute.xlu0 %170
      %v173 = vmax.f32 %v168, %v171
      %vm174 = vcmask 27672
      %175 = vst.msk [vmem:[#allocation2] sm:$0xf] %vm174, %v173
      %s176 = sld [smem:[#allocation8 + $0x4]]
      %s177 = sld [smem:[#allocation8 + $0x84]]
      %s178 = sld [smem:[#allocation8 + $0x104]]
      %s179 = sld [smem:[#allocation9 + $0x4]]
      %v180 = vstv %s176
      %v181 = vmul.f32 %v180, %v71
      %v182 = vstv %s177
      %v183 = vmul.f32 %v182, %v71
      %185 = vrot.lane.b32.xlu0 %v183, 127
      %v186 = vpop.permute.xlu0 %185
      %v188 = vadd.f32 %v181, %v186
      %v189 = vstv %s178
      %v190 = vmul.f32 %v189, %v66
      %v191 = vadd.f32 %v188, %v190
      %v192 = vstv %s179
      %v193 = vadd.f32 %v191, %v192
      %v194 = vmax.f32 %v193, 0.0
      %v195 = vld [vmem:[#allocation2] sm:$0xf]
      %197 = vrot.lane.b32.xlu0 %v194, 4
      %v198 = vpop.permute.xlu0 %197
      %v200 = vmax.f32 %v195, %v198
      %vm201 = vcmask 35872
      %202 = vst.msk [vmem:[#allocation2] sm:$0xf] %vm201, %v200
      %s203 = sld [smem:[#allocation8 + $0x5]]
      %s204 = sld [smem:[#allocation8 + $0x85]]
      %s205 = sld [smem:[#allocation8 + $0x105]]
      %s206 = sld [smem:[#allocation9 + $0x5]]
      %v207 = vstv %s203
      %v208 = vmul.f32 %v207, %v71
      %v209 = vstv %s204
      %v210 = vmul.f32 %v209, %v71
      %212 = vrot.lane.b32.xlu0 %v210, 127
      %v213 = vpop.permute.xlu0 %212
      %v215 = vadd.f32 %v208, %v213
      %v216 = vstv %s205
      %v217 = vmul.f32 %v216, %v66
      %v218 = vadd.f32 %v215, %v217
      %v219 = vstv %s206
      %v220 = vadd.f32 %v218, %v219
      %v221 = vmax.f32 %v220, 0.0
      %v222 = vld [vmem:[#allocation2] sm:$0xf]
      %224 = vrot.lane.b32.xlu0 %v221, 5
      %v225 = vpop.permute.xlu0 %224
      %v227 = vmax.f32 %v222, %v225
      %vm228 = vcmask 44072
      %229 = vst.msk [vmem:[#allocation2] sm:$0xf] %vm228, %v227
      %s230 = sld [smem:[#allocation8 + $0x6]]
      %s231 = sld [smem:[#allocation8 + $0x86]]
      %s232 = sld [smem:[#allocation8 + $0x106]]
      %s233 = sld [smem:[#allocation9 + $0x6]]
      %v234 = vstv %s230
      %v235 = vmul.f32 %v234, %v71
      %v236 = vstv %s231
      %v237 = vmul.f32 %v236, %v71
      %239 = vrot.lane.b32.xlu0 %v237, 127
      %v240 = vpop.permute.xlu0 %239
      %v242 = vadd.f32 %v235, %v240
      %v243 = vstv %s232
      %v244 = vmul.f32 %v243, %v66
      %v245 = vadd.f32 %v242, %v244
      %v246 = vstv %s233
      %v247 = vadd.f32 %v245, %v246
      %v248 = vmax.f32 %v247, 0.0
      %v249 = vld [vmem:[#allocation2] sm:$0xf]
      %251 = vrot.lane.b32.xlu0 %v248, 6
      %v252 = vpop.permute.xlu0 %251
      %v254 = vmax.f32 %v249, %v252
      %vm255 = vcmask 52272
      %256 = vst.msk [vmem:[#allocation2] sm:$0xf] %vm255, %v254
      %s257 = sld [smem:[#allocation8 + $0x7]]
      %s258 = sld [smem:[#allocation8 + $0x87]]
      %s259 = sld [smem:[#allocation8 + $0x107]]
      %s260 = sld [smem:[#allocation9 + $0x7]]
      %v261 = vstv %s257
      %v262 = vmul.f32 %v261, %v71
      %v263 = vstv %s258
      %v264 = vmul.f32 %v263, %v71
      %266 = vrot.lane.b32.xlu0 %v264, 127
      %v267 = vpop.permute.xlu0 %266
      %v269 = vadd.f32 %v262, %v267
      %v270 = vstv %s259
      %v271 = vmul.f32 %v270, %v66
      %v272 = vadd.f32 %v269, %v271
      %v273 = vstv %s260
      %v274 = vadd.f32 %v272, %v273
      %v275 = vmax.f32 %v274, 0.0
      %v276 = vld [vmem:[#allocation2] sm:$0xf]
      %278 = vrot.lane.b32.xlu0 %v275, 7
      %v279 = vpop.permute.xlu0 %278
      %v281 = vmax.f32 %v276, %v279
      %vm282 = vcmask 60472
      %283 = vst.msk [vmem:[#allocation2] sm:$0xf] %vm282, %v281
      %s284 = sld [smem:[#allocation8 + $0x8]]
      %s285 = sld [smem:[#allocation8 + $0x88]]
      %s286 = sld [smem:[#allocation8 + $0x108]]
      %s287 = sld [smem:[#allocation9 + $0x8]]
      %v288 = vstv %s284
      %v289 = vmul.f32 %v288, %v71
      %v290 = vstv %s285
      %v291 = vmul.f32 %v290, %v71
      %293 = vrot.lane.b32.xlu0 %v291, 127
      %v294 = vpop.permute.xlu0 %293
      %v296 = vadd.f32 %v289, %v294
      %v297 = vstv %s286
      %v298 = vmul.f32 %v297, %v66
      %v299 = vadd.f32 %v296, %v298
      %v300 = vstv %s287
      %v301 = vadd.f32 %v299, %v300
      %v302 = vmax.f32 %v301, 0.0
      %v303 = vld [vmem:[#allocation2] sm:$0xf]
      %305 = vrot.lane.b32.xlu0 %v302, 8
      %v306 = vpop.permute.xlu0 %305
      %v308 = vmax.f32 %v303, %v306
      %vm309 = vcmask 68672
      %310 = vst.msk [vmem:[#allocation2] sm:$0xf] %vm309, %v308
      %s311 = sld [smem:[#allocation8 + $0x9]]
      %s312 = sld [smem:[#allocation8 + $0x89]]
      %s313 = sld [smem:[#allocation8 + $0x109]]
      %s314 = sld [smem:[#allocation9 + $0x9]]
      %v315 = vstv %s311
      %v316 = vmul.f32 %v315, %v71
      %v317 = vstv %s312
      %v318 = vmul.f32 %v317, %v71
      %320 = vrot.lane.b32.xlu0 %v318, 127
      %v321 = vpop.permute.xlu0 %320
      %v323 = vadd.f32 %v316, %v321
      %v324 = vstv %s313
      %v325 = vmul.f32 %v324, %v66
      %v326 = vadd.f32 %v323, %v325
      %v327 = vstv %s314
      %v328 = vadd.f32 %v326, %v327
      %v329 = vmax.f32 %v328, 0.0
      %v330 = vld [vmem:[#allocation2] sm:$0xf]
      %332 = vrot.lane.b32.xlu0 %v329, 9
      %v333 = vpop.permute.xlu0 %332
      %v335 = vmax.f32 %v330, %v333
      %vm336 = vcmask 76872
      %337 = vst.msk [vmem:[#allocation2] sm:$0xf] %vm336, %v335
      %s338 = sld [smem:[#allocation8 + $0xa]]
      %s339 = sld [smem:[#allocation8 + $0x8a]]
      %s340 = sld [smem:[#allocation8 + $0x10a]]
      %s341 = sld [smem:[#allocation9 + $0xa]]
      %v342 = vstv %s338
      %v343 = vmul.f32 %v342, %v71
      %v344 = vstv %s339
      %v345 = vmul.f32 %v344, %v71
      %347 = vrot.lane.b32.xlu0 %v345, 127
      %v348 = vpop.permute.xlu0 %347
      %v350 = vadd.f32 %v343, %v348
      %v351 = vstv %s340
      %v352 = vmul.f32 %v351, %v66
      %v353 = vadd.f32 %v350, %v352
      %v354 = vstv %s341
      %v355 = vadd.f32 %v353, %v354
      %v356 = vmax.f32 %v355, 0.0
      %v357 = vld [vmem:[#allocation2] sm:$0xf]
      %359 = vrot.lane.b32.xlu0 %v356, 10
      %v360 = vpop.permute.xlu0 %359
      %v362 = vmax.f32 %v357, %v360
      %vm363 = vcmask 85072
      %364 = vst.msk [vmem:[#allocation2] sm:$0xf] %vm363, %v362
      %s365 = sld [smem:[#allocation8 + $0xb]]
      %s366 = sld [smem:[#allocation8 + $0x8b]]
      %s367 = sld [smem:[#allocation8 + $0x10b]]
      %s368 = sld [smem:[#allocation9 + $0xb]]
      %v369 = vstv %s365
      %v370 = vmul.f32 %v369, %v71
      %v371 = vstv %s366
      %v372 = vmul.f32 %v371, %v71
      %374 = vrot.lane.b32.xlu0 %v372, 127
      %v375 = vpop.permute.xlu0 %374
      %v377 = vadd.f32 %v370, %v375
      %v378 = vstv %s367
      %v379 = vmul.f32 %v378, %v66
      %v380 = vadd.f32 %v377, %v379
      %v381 = vstv %s368
      %v382 = vadd.f32 %v380, %v381
      %v383 = vmax.f32 %v382, 0.0
      %v384 = vld [vmem:[#allocation2] sm:$0xf]
      %386 = vrot.lane.b32.xlu0 %v383, 11
      %v387 = vpop.permute.xlu0 %386
      %v389 = vmax.f32 %v384, %v387
      %vm390 = vcmask 93272
      %391 = vst.msk [vmem:[#allocation2] sm:$0xf] %vm390, %v389
      %s392 = sld [smem:[#allocation8 + $0xc]]
      %s393 = sld [smem:[#allocation8 + $0x8c]]
      %s394 = sld [smem:[#allocation8 + $0x10c]]
      %s395 = sld [smem:[#allocation9 + $0xc]]
      %v396 = vstv %s392
      %v397 = vmul.f32 %v396, %v71
      %v398 = vstv %s393
      %v399 = vmul.f32 %v398, %v71
      %401 = vrot.lane.b32.xlu0 %v399, 127
      %v402 = vpop.permute.xlu0 %401
      %v404 = vadd.f32 %v397, %v402
      %v405 = vstv %s394
      %v406 = vmul.f32 %v405, %v66
      %v407 = vadd.f32 %v404, %v406
      %v408 = vstv %s395
      %v409 = vadd.f32 %v407, %v408
      %v410 = vmax.f32 %v409, 0.0
      %v411 = vld [vmem:[#allocation2] sm:$0xf]
      %413 = vrot.lane.b32.xlu0 %v410, 12
      %v414 = vpop.permute.xlu0 %413
      %v416 = vmax.f32 %v411, %v414
      %vm417 = vcmask 101472
      %418 = vst.msk [vmem:[#allocation2] sm:$0xf] %vm417, %v416
      %s419 = sld [smem:[#allocation8 + $0xd]]
      %s420 = sld [smem:[#allocation8 + $0x8d]]
      %s421 = sld [smem:[#allocation8 + $0x10d]]
      %s422 = sld [smem:[#allocation9 + $0xd]]
      %v423 = vstv %s419
      %v424 = vmul.f32 %v423, %v71
      %v425 = vstv %s420
      %v426 = vmul.f32 %v425, %v71
      %428 = vrot.lane.b32.xlu0 %v426, 127
      %v429 = vpop.permute.xlu0 %428
      %v431 = vadd.f32 %v424, %v429
      %v432 = vstv %s421
      %v433 = vmul.f32 %v432, %v66
      %v434 = vadd.f32 %v431, %v433
      %v435 = vstv %s422
      %v436 = vadd.f32 %v434, %v435
      %v437 = vmax.f32 %v436, 0.0
      %v438 = vld [vmem:[#allocation2] sm:$0xf]
      %440 = vrot.lane.b32.xlu0 %v437, 13
      %v441 = vpop.permute.xlu0 %440
      %v443 = vmax.f32 %v438, %v441
      %vm444 = vcmask 109672
      %445 = vst.msk [vmem:[#allocation2] sm:$0xf] %vm444, %v443
      %s446 = sld [smem:[#allocation8 + $0xe]]
      %s447 = sld [smem:[#allocation8 + $0x8e]]
      %s448 = sld [smem:[#allocation8 + $0x10e]]
      %s449 = sld [smem:[#allocation9 + $0xe]]
      %v450 = vstv %s446
      %v451 = vmul.f32 %v450, %v71
      %v452 = vstv %s447
      %v453 = vmul.f32 %v452, %v71
      %455 = vrot.lane.b32.xlu0 %v453, 127
      %v456 = vpop.permute.xlu0 %455
      %v458 = vadd.f32 %v451, %v456
      %v459 = vstv %s448
      %v460 = vmul.f32 %v459, %v66
      %v461 = vadd.f32 %v458, %v460
      %v462 = vstv %s449
      %v463 = vadd.f32 %v461, %v462
      %v464 = vmax.f32 %v463, 0.0
      %v465 = vld [vmem:[#allocation2] sm:$0xf]
      %467 = vrot.lane.b32.xlu0 %v464, 14
      %v468 = vpop.permute.xlu0 %467
      %v470 = vmax.f32 %v465, %v468
      %vm471 = vcmask 117872
      %472 = vst.msk [vmem:[#allocation2] sm:$0xf] %vm471, %v470
      %s473 = sld [smem:[#allocation8 + $0xf]]
      %s474 = sld [smem:[#allocation8 + $0x8f]]
      %s475 = sld [smem:[#allocation8 + $0x10f]]
      %s476 = sld [smem:[#allocation9 + $0xf]]
      %v477 = vstv %s473
      %v478 = vmul.f32 %v477, %v71
      %v479 = vstv %s474
      %v480 = vmul.f32 %v479, %v71
      %482 = vrot.lane.b32.xlu0 %v480, 127
      %v483 = vpop.permute.xlu0 %482
      %v485 = vadd.f32 %v478, %v483
      %v486 = vstv %s475
      %v487 = vmul.f32 %v486, %v66
      %v488 = vadd.f32 %v485, %v487
      %v489 = vstv %s476
      %v490 = vadd.f32 %v488, %v489
      %v491 = vmax.f32 %v490, 0.0
      %v492 = vld [vmem:[#allocation2] sm:$0xf]
      %494 = vrot.lane.b32.xlu0 %v491, 15
      %v495 = vpop.permute.xlu0 %494
      %v497 = vmax.f32 %v492, %v495
      %vm498 = vcmask 126072
      %499 = vst.msk [vmem:[#allocation2] sm:$0xf] %vm498, %v497
    $region41: #{tpu_custom_call.1} parent=1 // pred_fallthru
      _
    %v500 = vld [vmem:[#allocation3] sm:$0xf]
    %502 = vrot.lane.b32.xlu0 %v500, 127
    %v503 = vpop.permute.xlu0 %502
    %506 = vrot.lane.b32.xlu0 %v66, 1
    %v507 = vpop.permute.xlu0 %506
    %vm509 = vcmask 7168
    %v510 = vsel %vm509, %v503, %v507
    %511 = vrot.lane.b32.xlu0 %v66, 127
    %v512 = vpop.permute.xlu0 %511
    %vm514 = vcmask 121856
    %v515 = vsel %vm514, %v512, 0.0
    %v516 = vlaneseq
    %v517 = vand.u32 %v516, 127
    %vm518 = vcmp.lt.s32.totalorder %v517, 15
    %s519 = scalar_select %p58, 1, 0
    %v520 = vstv %s519
    %vm521 = vcmp.eq.s32.totalorder %v520, 1
    %vm522 = vmor %vm518, %vm521
    %s523 = sld [smem:[#allocation8]]
    %s524 = sld [smem:[#allocation8 + $0x80]]
    %s525 = sld [smem:[#allocation8 + $0x100]]
    %s526 = sld [smem:[#allocation9]]
    %v527 = vstv %s523
    %v528 = vmul.f32 %v527, %v510
    %v529 = vstv %s524
    %v530 = vmul.f32 %v529, %v66
    %v531 = vadd.f32 %v528, %v530
    %v532 = vstv %s525
    %v533 = vmul.f32 %v532, %v515
    %v534 = vadd.f32 %v531, %v533
    %v535 = vstv %s526
    %v536 = vadd.f32 %v534, %v535
    %v537 = vmax.f32 %v536, 0.0
    %v538 = vsel %vm522, 1, 0
    %vm539 = vcmp.eq.s32.totalorder %v538, 1
    %v540 = vsel %vm539, %v537, 0.0
    %vm541 = vcmask 125952
    %v542 = vsel %vm541, %v540, -inf
    %543 = vmax.xlane.f32.xlu0 %v542
    %v544 = vpop.xlane.xlu0 %543
    %v545 = vld [vmem:[#allocation2] sm:$0xf]
    %v546 = vmax.f32 %v545, %v544
    %vm547 = vcmask 3072
    %548 = vst.msk [vmem:[#allocation2] sm:$0xf] %vm547, %v546
    %s549 = sld [smem:[#allocation8 + $0x1]]
    %s550 = sld [smem:[#allocation8 + $0x81]]
    %s551 = sld [smem:[#allocation8 + $0x101]]
    %s552 = sld [smem:[#allocation9 + $0x1]]
    %v553 = vstv %s549
    %v554 = vmul.f32 %v553, %v510
    %v555 = vstv %s550
    %v556 = vmul.f32 %v555, %v66
    %v557 = vadd.f32 %v554, %v556
    %v558 = vstv %s551
    %v559 = vmul.f32 %v558, %v515
    %v560 = vadd.f32 %v557, %v559
    %v561 = vstv %s552
    %v562 = vadd.f32 %v560, %v561
    %v563 = vmax.f32 %v562, 0.0
    %v564 = vsel %vm539, %v563, 0.0
    %v565 = vsel %vm541, %v564, -inf
    %566 = vmax.xlane.f32.xlu0 %v565
    %v567 = vpop.xlane.xlu0 %566
    %v568 = vld [vmem:[#allocation2] sm:$0xf]
    %v569 = vmax.f32 %v568, %v567
    %vm570 = vcmask 11272
    %571 = vst.msk [vmem:[#allocation2] sm:$0xf] %vm570, %v569
    %s572 = sld [smem:[#allocation8 + $0x2]]
    %s573 = sld [smem:[#allocation8 + $0x82]]
    %s574 = sld [smem:[#allocation8 + $0x102]]
    %s575 = sld [smem:[#allocation9 + $0x2]]
    %v576 = vstv %s572
    %v577 = vmul.f32 %v576, %v510
    %v578 = vstv %s573
    %v579 = vmul.f32 %v578, %v66
    %v580 = vadd.f32 %v577, %v579
    %v581 = vstv %s574
    %v582 = vmul.f32 %v581, %v515
    %v583 = vadd.f32 %v580, %v582
    %v584 = vstv %s575
    %v585 = vadd.f32 %v583, %v584
    %v586 = vmax.f32 %v585, 0.0
    %v587 = vsel %vm539, %v586, 0.0
    %v588 = vsel %vm541, %v587, -inf
    %589 = vmax.xlane.f32.xlu0 %v588
    %v590 = vpop.xlane.xlu0 %589
    %v591 = vld [vmem:[#allocation2] sm:$0xf]
    %v592 = vmax.f32 %v591, %v590
    %vm593 = vcmask 19472
    %594 = vst.msk [vmem:[#allocation2] sm:$0xf] %vm593, %v592
    %s595 = sld [smem:[#allocation8 + $0x3]]
    %s596 = sld [smem:[#allocation8 + $0x83]]
    %s597 = sld [smem:[#allocation8 + $0x103]]
    %s598 = sld [smem:[#allocation9 + $0x3]]
    %v599 = vstv %s595
    %v600 = vmul.f32 %v599, %v510
    %v601 = vstv %s596
    %v602 = vmul.f32 %v601, %v66
    %v603 = vadd.f32 %v600, %v602
    %v604 = vstv %s597
    %v605 = vmul.f32 %v604, %v515
    %v606 = vadd.f32 %v603, %v605
    %v607 = vstv %s598
    %v608 = vadd.f32 %v606, %v607
    %v609 = vmax.f32 %v608, 0.0
    %v610 = vsel %vm539, %v609, 0.0
    %v611 = vsel %vm541, %v610, -inf
    %612 = vmax.xlane.f32.xlu0 %v611
    %v613 = vpop.xlane.xlu0 %612
    %v614 = vld [vmem:[#allocation2] sm:$0xf]
    %v615 = vmax.f32 %v614, %v613
    %vm616 = vcmask 27672
    %617 = vst.msk [vmem:[#allocation2] sm:$0xf] %vm616, %v615
    %s618 = sld [smem:[#allocation8 + $0x4]]
    %s619 = sld [smem:[#allocation8 + $0x84]]
    %s620 = sld [smem:[#allocation8 + $0x104]]
    %s621 = sld [smem:[#allocation9 + $0x4]]
    %v622 = vstv %s618
    %v623 = vmul.f32 %v622, %v510
    %v624 = vstv %s619
    %v625 = vmul.f32 %v624, %v66
    %v626 = vadd.f32 %v623, %v625
    %v627 = vstv %s620
    %v628 = vmul.f32 %v627, %v515
    %v629 = vadd.f32 %v626, %v628
    %v630 = vstv %s621
    %v631 = vadd.f32 %v629, %v630
    %v632 = vmax.f32 %v631, 0.0
    %v633 = vsel %vm539, %v632, 0.0
    %v634 = vsel %vm541, %v633, -inf
    %635 = vmax.xlane.f32.xlu0 %v634
    %v636 = vpop.xlane.xlu0 %635
    %v637 = vld [vmem:[#allocation2] sm:$0xf]
    %v638 = vmax.f32 %v637, %v636
    %vm639 = vcmask 35872
    %640 = vst.msk [vmem:[#allocation2] sm:$0xf] %vm639, %v638
    %s641 = sld [smem:[#allocation8 + $0x5]]
    %s642 = sld [smem:[#allocation8 + $0x85]]
    %s643 = sld [smem:[#allocation8 + $0x105]]
    %s644 = sld [smem:[#allocation9 + $0x5]]
    %v645 = vstv %s641
    %v646 = vmul.f32 %v645, %v510
    %v647 = vstv %s642
    %v648 = vmul.f32 %v647, %v66
    %v649 = vadd.f32 %v646, %v648
    %v650 = vstv %s643
    %v651 = vmul.f32 %v650, %v515
    %v652 = vadd.f32 %v649, %v651
    %v653 = vstv %s644
    %v654 = vadd.f32 %v652, %v653
    %v655 = vmax.f32 %v654, 0.0
    %v656 = vsel %vm539, %v655, 0.0
    %v657 = vsel %vm541, %v656, -inf
    %658 = vmax.xlane.f32.xlu0 %v657
    %v659 = vpop.xlane.xlu0 %658
    %v660 = vld [vmem:[#allocation2] sm:$0xf]
    %v661 = vmax.f32 %v660, %v659
    %vm662 = vcmask 44072
    %663 = vst.msk [vmem:[#allocation2] sm:$0xf] %vm662, %v661
    %s664 = sld [smem:[#allocation8 + $0x6]]
    %s665 = sld [smem:[#allocation8 + $0x86]]
    %s666 = sld [smem:[#allocation8 + $0x106]]
    %s667 = sld [smem:[#allocation9 + $0x6]]
    %v668 = vstv %s664
    %v669 = vmul.f32 %v668, %v510
    %v670 = vstv %s665
    %v671 = vmul.f32 %v670, %v66
    %v672 = vadd.f32 %v669, %v671
    %v673 = vstv %s666
    %v674 = vmul.f32 %v673, %v515
    %v675 = vadd.f32 %v672, %v674
    %v676 = vstv %s667
    %v677 = vadd.f32 %v675, %v676
    %v678 = vmax.f32 %v677, 0.0
    %v679 = vsel %vm539, %v678, 0.0
    %v680 = vsel %vm541, %v679, -inf
    %681 = vmax.xlane.f32.xlu0 %v680
    %v682 = vpop.xlane.xlu0 %681
    %v683 = vld [vmem:[#allocation2] sm:$0xf]
    %v684 = vmax.f32 %v683, %v682
    %vm685 = vcmask 52272
    %686 = vst.msk [vmem:[#allocation2] sm:$0xf] %vm685, %v684
    %s687 = sld [smem:[#allocation8 + $0x7]]
    %s688 = sld [smem:[#allocation8 + $0x87]]
    %s689 = sld [smem:[#allocation8 + $0x107]]
    %s690 = sld [smem:[#allocation9 + $0x7]]
    %v691 = vstv %s687
    %v692 = vmul.f32 %v691, %v510
    %v693 = vstv %s688
    %v694 = vmul.f32 %v693, %v66
    %v695 = vadd.f32 %v692, %v694
    %v696 = vstv %s689
    %v697 = vmul.f32 %v696, %v515
    %v698 = vadd.f32 %v695, %v697
    %v699 = vstv %s690
    %v700 = vadd.f32 %v698, %v699
    %v701 = vmax.f32 %v700, 0.0
    %v702 = vsel %vm539, %v701, 0.0
    %v703 = vsel %vm541, %v702, -inf
    %704 = vmax.xlane.f32.xlu0 %v703
    %v705 = vpop.xlane.xlu0 %704
    %v706 = vld [vmem:[#allocation2] sm:$0xf]
    %v707 = vmax.f32 %v706, %v705
    %vm708 = vcmask 60472
    %709 = vst.msk [vmem:[#allocation2] sm:$0xf] %vm708, %v707
    %s710 = sld [smem:[#allocation8 + $0x8]]
    %s711 = sld [smem:[#allocation8 + $0x88]]
    %s712 = sld [smem:[#allocation8 + $0x108]]
    %s713 = sld [smem:[#allocation9 + $0x8]]
    %v714 = vstv %s710
    %v715 = vmul.f32 %v714, %v510
    %v716 = vstv %s711
    %v717 = vmul.f32 %v716, %v66
    %v718 = vadd.f32 %v715, %v717
    %v719 = vstv %s712
    %v720 = vmul.f32 %v719, %v515
    %v721 = vadd.f32 %v718, %v720
    %v722 = vstv %s713
    %v723 = vadd.f32 %v721, %v722
    %v724 = vmax.f32 %v723, 0.0
    %v725 = vsel %vm539, %v724, 0.0
    %v726 = vsel %vm541, %v725, -inf
    %727 = vmax.xlane.f32.xlu0 %v726
    %v728 = vpop.xlane.xlu0 %727
    %v729 = vld [vmem:[#allocation2] sm:$0xf]
    %v730 = vmax.f32 %v729, %v728
    %vm731 = vcmask 68672
    %732 = vst.msk [vmem:[#allocation2] sm:$0xf] %vm731, %v730
    %s733 = sld [smem:[#allocation8 + $0x9]]
    %s734 = sld [smem:[#allocation8 + $0x89]]
    %s735 = sld [smem:[#allocation8 + $0x109]]
    %s736 = sld [smem:[#allocation9 + $0x9]]
    %v737 = vstv %s733
    %v738 = vmul.f32 %v737, %v510
    %v739 = vstv %s734
    %v740 = vmul.f32 %v739, %v66
    %v741 = vadd.f32 %v738, %v740
    %v742 = vstv %s735
    %v743 = vmul.f32 %v742, %v515
    %v744 = vadd.f32 %v741, %v743
    %v745 = vstv %s736
    %v746 = vadd.f32 %v744, %v745
    %v747 = vmax.f32 %v746, 0.0
    %v748 = vsel %vm539, %v747, 0.0
    %v749 = vsel %vm541, %v748, -inf
    %750 = vmax.xlane.f32.xlu0 %v749
    %v751 = vpop.xlane.xlu0 %750
    %v752 = vld [vmem:[#allocation2] sm:$0xf]
    %v753 = vmax.f32 %v752, %v751
    %vm754 = vcmask 76872
    %755 = vst.msk [vmem:[#allocation2] sm:$0xf] %vm754, %v753
    %s756 = sld [smem:[#allocation8 + $0xa]]
    %s757 = sld [smem:[#allocation8 + $0x8a]]
    %s758 = sld [smem:[#allocation8 + $0x10a]]
    %s759 = sld [smem:[#allocation9 + $0xa]]
    %v760 = vstv %s756
    %v761 = vmul.f32 %v760, %v510
    %v762 = vstv %s757
    %v763 = vmul.f32 %v762, %v66
    %v764 = vadd.f32 %v761, %v763
    %v765 = vstv %s758
    %v766 = vmul.f32 %v765, %v515
    %v767 = vadd.f32 %v764, %v766
    %v768 = vstv %s759
    %v769 = vadd.f32 %v767, %v768
    %v770 = vmax.f32 %v769, 0.0
    %v771 = vsel %vm539, %v770, 0.0
    %v772 = vsel %vm541, %v771, -inf
    %773 = vmax.xlane.f32.xlu0 %v772
    %v774 = vpop.xlane.xlu0 %773
    %v775 = vld [vmem:[#allocation2] sm:$0xf]
    %v776 = vmax.f32 %v775, %v774
    %vm777 = vcmask 85072
    %778 = vst.msk [vmem:[#allocation2] sm:$0xf] %vm777, %v776
    %s779 = sld [smem:[#allocation8 + $0xb]]
    %s780 = sld [smem:[#allocation8 + $0x8b]]
    %s781 = sld [smem:[#allocation8 + $0x10b]]
    %s782 = sld [smem:[#allocation9 + $0xb]]
    %v783 = vstv %s779
    %v784 = vmul.f32 %v783, %v510
    %v785 = vstv %s780
    %v786 = vmul.f32 %v785, %v66
    %v787 = vadd.f32 %v784, %v786
    %v788 = vstv %s781
    %v789 = vmul.f32 %v788, %v515
    %v790 = vadd.f32 %v787, %v789
    %v791 = vstv %s782
    %v792 = vadd.f32 %v790, %v791
    %v793 = vmax.f32 %v792, 0.0
    %v794 = vsel %vm539, %v793, 0.0
    %v795 = vsel %vm541, %v794, -inf
    %796 = vmax.xlane.f32.xlu0 %v795
    %v797 = vpop.xlane.xlu0 %796
    %v798 = vld [vmem:[#allocation2] sm:$0xf]
    %v799 = vmax.f32 %v798, %v797
    %vm800 = vcmask 93272
    %801 = vst.msk [vmem:[#allocation2] sm:$0xf] %vm800, %v799
    %s802 = sld [smem:[#allocation8 + $0xc]]
    %s803 = sld [smem:[#allocation8 + $0x8c]]
    %s804 = sld [smem:[#allocation8 + $0x10c]]
    %s805 = sld [smem:[#allocation9 + $0xc]]
    %v806 = vstv %s802
    %v807 = vmul.f32 %v806, %v510
    %v808 = vstv %s803
    %v809 = vmul.f32 %v808, %v66
    %v810 = vadd.f32 %v807, %v809
    %v811 = vstv %s804
    %v812 = vmul.f32 %v811, %v515
    %v813 = vadd.f32 %v810, %v812
    %v814 = vstv %s805
    %v815 = vadd.f32 %v813, %v814
    %v816 = vmax.f32 %v815, 0.0
    %v817 = vsel %vm539, %v816, 0.0
    %v818 = vsel %vm541, %v817, -inf
    %819 = vmax.xlane.f32.xlu0 %v818
    %v820 = vpop.xlane.xlu0 %819
    %v821 = vld [vmem:[#allocation2] sm:$0xf]
    %v822 = vmax.f32 %v821, %v820
    %vm823 = vcmask 101472
    %824 = vst.msk [vmem:[#allocation2] sm:$0xf] %vm823, %v822
    %s825 = sld [smem:[#allocation8 + $0xd]]
    %s826 = sld [smem:[#allocation8 + $0x8d]]
    %s827 = sld [smem:[#allocation8 + $0x10d]]
    %s828 = sld [smem:[#allocation9 + $0xd]]
    %v829 = vstv %s825
    %v830 = vmul.f32 %v829, %v510
    %v831 = vstv %s826
    %v832 = vmul.f32 %v831, %v66
    %v833 = vadd.f32 %v830, %v832
    %v834 = vstv %s827
    %v835 = vmul.f32 %v834, %v515
    %v836 = vadd.f32 %v833, %v835
    %v837 = vstv %s828
    %v838 = vadd.f32 %v836, %v837
    %v839 = vmax.f32 %v838, 0.0
    %v840 = vsel %vm539, %v839, 0.0
    %v841 = vsel %vm541, %v840, -inf
    %842 = vmax.xlane.f32.xlu0 %v841
    %v843 = vpop.xlane.xlu0 %842
    %v844 = vld [vmem:[#allocation2] sm:$0xf]
    %v845 = vmax.f32 %v844, %v843
    %vm846 = vcmask 109672
    %847 = vst.msk [vmem:[#allocation2] sm:$0xf] %vm846, %v845
    %s848 = sld [smem:[#allocation8 + $0xe]]
    %s849 = sld [smem:[#allocation8 + $0x8e]]
    %s850 = sld [smem:[#allocation8 + $0x10e]]
    %s851 = sld [smem:[#allocation9 + $0xe]]
    %v852 = vstv %s848
    %v853 = vmul.f32 %v852, %v510
    %v854 = vstv %s849
    %v855 = vmul.f32 %v854, %v66
    %v856 = vadd.f32 %v853, %v855
    %v857 = vstv %s850
    %v858 = vmul.f32 %v857, %v515
    %v859 = vadd.f32 %v856, %v858
    %v860 = vstv %s851
    %v861 = vadd.f32 %v859, %v860
    %v862 = vmax.f32 %v861, 0.0
    %v863 = vsel %vm539, %v862, 0.0
    %v864 = vsel %vm541, %v863, -inf
    %865 = vmax.xlane.f32.xlu0 %v864
    %v866 = vpop.xlane.xlu0 %865
    %v867 = vld [vmem:[#allocation2] sm:$0xf]
    %v868 = vmax.f32 %v867, %v866
    %vm869 = vcmask 117872
    %870 = vst.msk [vmem:[#allocation2] sm:$0xf] %vm869, %v868
    %s871 = sld [smem:[#allocation8 + $0xf]]
    %s872 = sld [smem:[#allocation8 + $0x8f]]
    %s873 = sld [smem:[#allocation8 + $0x10f]]
    %s874 = sld [smem:[#allocation9 + $0xf]]
    %v875 = vstv %s871
    %v876 = vmul.f32 %v875, %v510
    %v877 = vstv %s872
    %v878 = vmul.f32 %v877, %v66
    %v879 = vadd.f32 %v876, %v878
    %v880 = vstv %s873
    %v881 = vmul.f32 %v880, %v515
    %v882 = vadd.f32 %v879, %v881
    %v883 = vstv %s874
    %v884 = vadd.f32 %v882, %v883
    %v885 = vmax.f32 %v884, 0.0
    %v886 = vsel %vm539, %v885, 0.0
    %v887 = vsel %vm541, %v886, -inf
    %888 = vmax.xlane.f32.xlu0 %v887
    %v889 = vpop.xlane.xlu0 %888
    %v890 = vld [vmem:[#allocation2] sm:$0xf]
    %v891 = vmax.f32 %v890, %v889
    %vm892 = vcmask 126072
    %893 = vst.msk [vmem:[#allocation2] sm:$0xf] %vm892, %v891
    %894 = vrot.lane.b32.xlu0 %v66, 114
    %v895 = vpop.permute.xlu0 %894
    %vm897 = vcmask 11264
    %898 = vst.msk [vmem:[#allocation3] sm:$0xf] %vm897, %v895
    // Predicated region
    $region42: #{tpu_custom_call.1} parent=1 // pred_check
      %p899 = pneg %p58
    $region43: #{tpu_custom_call.1} parent=1 // pred_check_branch
      %901 = sbr.rel (%p899) target = $region45
    $region44: #{tpu_custom_call.1} parent=1 // pred_region
      %v902 = vld [vmem:[#allocation2] sm:$0xf]
      %v903 = vld [vmem:[%s3] sm:$0x1]
      %v905 = vlaneseq
      %v906 = vshrl.u32 %v905, 7
      %v907 = vsub.s32 0, %v906
      %v908 = vrot.slane %v903, %v907
      %v910 = vmul.f32 %v902, %v908
      %v911 = vsel %vm541, %v910, 0.0
      %912 = vadd.xlane.f32.xlu0 %v911
      %v913 = vpop.xlane.xlu0 %912
      %s914 = sld [smem:[#allocation4]]
      %v915 = vstv %s914
      %v916 = vadd.f32 %v913, %v915
      %917 = vst.msk [vmem:[%s5] sm:$0xf] %vm547, %v916
    $region45: #{tpu_custom_call.1} parent=1 // pred_fallthru
      _
    // Predicated region
    $region46: #{tpu_custom_call.1} parent=1 // pred_check
      _
    $region47: #{tpu_custom_call.1} parent=1 // pred_check_branch
      %919 = sbr.rel (0) target = $region49
    $region48: #{tpu_custom_call.1} parent=1 // pred_region
      _
    $region49: #{tpu_custom_call.1} parent=1 // pred_fallthru
      _
    // Predicated region
    $region50: #{tpu_custom_call.1} parent=1 // pred_check
      _
    $region51: #{tpu_custom_call.1} parent=1 // pred_check_branch
      %921 = sbr.rel (0) target = $region53
    $region52: #{tpu_custom_call.1} parent=1 // pred_region
      _
    $region53: #{tpu_custom_call.1} parent=1 // pred_fallthru
      _
    %922 = vsyncpa [#allocation6], 1
    %923 = vsyncpa [#allocation7], 1
    %924 = vsyncpa [#allocation10], 1

</llo_original>
